<compile_context>
chip_gen: v7x
topology: tpu7x:2x2x1
jax: 0.10.0
libtpu: 0.0.40
codegen_flags: <defaults>
</compile_context>

<pallas_src>
import functools

import jax
import jax.numpy as jnp
from jax.experimental import pallas as pl
from jax.experimental.pallas import tpu as pltpu

STATE_DIM = 8          # LunarLander-v3 observation dim
ENSEMBLE_SIZE = 3
HIDDEN_DIMS = (128, 64)
H1, H2 = HIDDEN_DIMS

TB_MAX_DEFAULT = 2048  # batch-tile cap; fits comfortably in v7x's 64 MiB VMEM


def _reward_ensemble_kernel(x_ref, w1t_ref, b1_ref, w2t_ref, b2_ref,
                            w3_ref, b3_ref, out_ref):
    """One batch tile, all ensemble members (eval mode: dropout = identity).

    Batch-in-lanes layout (batch is the lane axis everywhere):
      x_ref   : (S, TB)        VMEM   f32 or bf16
      w1t_ref : (E, H1, S)     VMEM   f32 or bf16   (layer-1 weights, transposed)
      b1_ref  : (E, H1, 1)     VMEM   f32
      w2t_ref : (E, H2, H1)    VMEM   f32 or bf16   (layer-2 weights, transposed)
      b2_ref  : (E, H2, 1)     VMEM   f32
      w3_ref  : (E, H2, 1)     VMEM   f32           (layer-3 weights as columns)
      b3_ref  : (E,)           SMEM   f32           (layer-3 biases as scalars)
      out_ref : (E, TB)        VMEM   f32
    """
    x = x_ref[...]                                          # (S, TB)
    n_members = w1t_ref.shape[0]

    for e in range(n_members):                              # unrolled at trace time
        # Layer 1: (H1, S) @ (S, TB) on the MXU, f32 accumulate.
        h1 = jnp.dot(w1t_ref[e], x, preferred_element_type=jnp.float32)
        h1 = jnp.maximum(h1 + b1_ref[e], 0.0)               # (H1, TB), f32 bias/ReLU
        # Dropout(p=0.5) in eval mode -> identity.

        # Layer 2: (H2, H1) @ (H1, TB) on the MXU, f32 accumulate.
        h1 = h1.astype(w2t_ref.dtype)                       # no-op in the f32 path
        h2 = jnp.dot(w2t_ref[e], h1, preferred_element_type=jnp.float32)
        h2 = jnp.maximum(h2 + b2_ref[e], 0.0)               # (H2, TB)
        # Dropout(p=0.5) in eval mode -> identity.

        # Layer 3 (single output feature): VPU multiply + sublane (XLU) reduce
        # instead of a degenerate (1, H2) MXU matmul; b3 is an SMEM scalar.
        o = jnp.sum(h2 * w3_ref[e], axis=0, keepdims=True) + b3_ref[e]   # (1, TB)

        # Lane-dense single-row store into the (E, TB) output slab.
        out_ref[pl.ds(e, 1), :] = o


def reward_ensemble_forward(state, params, *, matmul_dtype=jnp.float32,
                            tb_max=TB_MAX_DEFAULT):
    """Run all ensemble members on `state` (eval mode).

    state:  (B, state_dim) float32
    params: dict of stacked ensemble parameters (leading axis E), matching the
            PyTorch nn.Linear layout: w1 (E,S,H1), b1 (E,1,H1), w2 (E,H1,H2),
            b2 (E,1,H2), w3 (E,H2,1), b3 (E,1,1).
    matmul_dtype: dtype of the MXU operands (jnp.bfloat16 recommended on
            v6e/v7x; accumulation and bias/ReLU math stay f32).
    returns (E, B, 1) float32 -- equivalent to the list of per-network outputs.
    """
    w1, b1, w2, b2, w3, b3 = (params["w1"], params["b1"], params["w2"],
                              params["b2"], params["w3"], params["b3"])
    B, S = state.shape
    E, _, h1_dim = w1.shape
    h2_dim = w2.shape[2]

    # --- Relayout to batch-in-lanes (tiny XLA ops outside the kernel). ---
    state_t = state.T.astype(matmul_dtype)                   # (S, B)
    w1t = jnp.swapaxes(w1, 1, 2).astype(matmul_dtype)        # (E, H1, S)
    w2t = jnp.swapaxes(w2, 1, 2).astype(matmul_dtype)        # (E, H2, H1)
    b1c = jnp.swapaxes(b1, 1, 2).astype(jnp.float32)         # (E, H1, 1)
    b2c = jnp.swapaxes(b2, 1, 2).astype(jnp.float32)         # (E, H2, 1)
    w3c = w3.astype(jnp.float32)                              # (E, H2, 1)
    b3v = b3.reshape(E).astype(jnp.float32)                   # (E,)

    # --- Batch tiling: TB <= tb_max (multiple of 128 when tiling is needed). ---
    if B <= tb_max:
        tb, b_pad = B, B                  # single step; block spans the full batch
    else:
        tb = tb_max
        b_pad = pl.cdiv(B, tb) * tb
    if b_pad != B:
        state_t = jnp.pad(state_t, ((0, 0), (0, b_pad - B)))
    nb = b_pad // tb

    out_eb = pl.pallas_call(
        _reward_ensemble_kernel,
        out_shape=jax.ShapeDtypeStruct((E, b_pad), jnp.float32),
        grid=(nb,),
        in_specs=[
            pl.BlockSpec((S, tb), lambda i: (0, i)),             # state (per tile)
            pl.BlockSpec((E, h1_dim, S), lambda i: (0, 0, 0)),   # w1t (resident)
            pl.BlockSpec((E, h1_dim, 1), lambda i: (0, 0, 0)),   # b1  (resident)
            pl.BlockSpec((E, h2_dim, h1_dim), lambda i: (0, 0, 0)),  # w2t
            pl.BlockSpec((E, h2_dim, 1), lambda i: (0, 0, 0)),   # b2
            pl.BlockSpec((E, h2_dim, 1), lambda i: (0, 0, 0)),   # w3 columns
            pl.BlockSpec(memory_space=pltpu.MemorySpace.SMEM),   # b3 scalars
        ],
        out_specs=pl.BlockSpec((E, tb), lambda i: (0, i)),
        compiler_params=pltpu.CompilerParams(
            dimension_semantics=("parallel",),       # shards batch tiles on v7x's 2 TCs
            vmem_limit_bytes=32 * 1024 * 1024,
        ),
    )(state_t, w1t, b1c, w2t, b2c, w3c, b3v)

    # Present the ensemble-major (E, B, 1) result expected by the module.
    return out_eb[:, :B, None]


def init_params(key, state_dim=STATE_DIM, ensemble_size=ENSEMBLE_SIZE,
                hidden_dims=HIDDEN_DIMS):
    """Deterministic synthetic init (same shapes as the PyTorch nn.Linear layers)."""
    h1, h2 = hidden_dims
    ks = jax.random.split(key, 6)
    return {
        "w1": jax.random.normal(ks[0], (ensemble_size, state_dim, h1),
                                jnp.float32) * (1.0 / jnp.sqrt(state_dim)),
        "b1": jax.random.normal(ks[1], (ensemble_size, 1, h1),
                                jnp.float32) * 0.01,
        "w2": jax.random.normal(ks[2], (ensemble_size, h1, h2),
                                jnp.float32) * (1.0 / jnp.sqrt(h1)),
        "b2": jax.random.normal(ks[3], (ensemble_size, 1, h2),
                                jnp.float32) * 0.01,
        "w3": jax.random.normal(ks[4], (ensemble_size, h2, 1),
                                jnp.float32) * (1.0 / jnp.sqrt(h2)),
        "b3": jax.random.normal(ks[5], (ensemble_size, 1, 1),
                                jnp.float32) * 0.01,
    }


def reference_forward(state, params):
    """Pure-JAX reference matching the PyTorch forward (eval mode)."""
    def one(w1, b1, w2, b2, w3, b3):
        h1 = jnp.maximum(state @ w1 + b1, 0.0)
        h2 = jnp.maximum(h1 @ w2 + b2, 0.0)
        return h2 @ w3 + b3
    return jax.vmap(one)(params["w1"], params["b1"], params["w2"],
                         params["b2"], params["w3"], params["b3"])


if __name__ == "__main__":
    key = jax.random.PRNGKey(0)
    pkey, xkey = jax.random.split(key)
    params = init_params(pkey)

    # --- Small example, f32 matmul path (single grid step). ---
    batch = 8
    state = jax.random.normal(xkey, (batch, STATE_DIM), jnp.float32)
    out = jax.block_until_ready(jax.jit(reward_ensemble_forward)(state, params))
    ref = reference_forward(state, params)
    assert out.shape == (ENSEMBLE_SIZE, batch, 1)
    assert jnp.allclose(out, ref, atol=1e-4, rtol=1e-4)

    # --- bf16 MXU operands (v6e/v7x-oriented), f32 accumulation: loose tol. ---
    fwd_bf16 = jax.jit(functools.partial(reward_ensemble_forward,
                                         matmul_dtype=jnp.bfloat16))
    out_bf16 = jax.block_until_ready(fwd_bf16(state, params))
    assert out_bf16.shape == (ENSEMBLE_SIZE, batch, 1)
    assert jnp.allclose(out_bf16, ref, atol=5e-2, rtol=5e-2)

    # --- Multi-step batch grid + padding path (small forced tile for test). ---
    batch2 = 300
    state2 = jax.random.normal(jax.random.PRNGKey(1), (batch2, STATE_DIM),
                               jnp.float32)
    fwd_grid = jax.jit(functools.partial(reward_ensemble_forward, tb_max=128))
    out2 = jax.block_until_ready(fwd_grid(state2, params))
    ref2 = reference_forward(state2, params)
    assert out2.shape == (ENSEMBLE_SIZE, batch2, 1)
    assert jnp.allclose(out2, ref2, atol=1e-4, rtol=1e-4)

    # TODO(synk): training-mode dropout masking and the preference-based
    # update()/Adam step are not part of the eval forward pass and are not
    # implemented here.
    print("KERNEL_OK")
</pallas_src>

<mosaic_0001>
module attributes {stable_mosaic.version = 11 : i64} {
  func.func @_reward_ensemble_kernel(%arg0: i32, %arg1: memref<8x8xf32, #tpu.memory_space<vmem>>, %arg2: memref<3x128x8xf32, #tpu.memory_space<vmem>>, %arg3: memref<3x128x1xf32, #tpu.memory_space<vmem>>, %arg4: memref<3x64x128xf32, #tpu.memory_space<vmem>>, %arg5: memref<3x64x1xf32, #tpu.memory_space<vmem>>, %arg6: memref<3x64x1xf32, #tpu.memory_space<vmem>>, %arg7: memref<3xf32, #tpu.memory_space<smem>>, %arg8: memref<3x8xf32, #tpu.memory_space<vmem>>) attributes {dimension_semantics = [#tpu.dimension_semantics<parallel>], iteration_bounds = array<i64: 1>, scalar_prefetch = 0 : i64, scratch_operands = 0 : i64, tpu.core_type = #tpu.core_type<tc>, window_params = [{transform_indices = @transform_0, window_bounds = array<i64: 8, 8>}, {pipeline_mode = #tpu.pipeline_mode<synchronous>, transform_indices = @transform_1, window_bounds = array<i64: 3, 128, 8>}, {pipeline_mode = #tpu.pipeline_mode<synchronous>, transform_indices = @transform_2, window_bounds = array<i64: 3, 128, 1>}, {pipeline_mode = #tpu.pipeline_mode<synchronous>, transform_indices = @transform_3, window_bounds = array<i64: 3, 64, 128>}, {pipeline_mode = #tpu.pipeline_mode<synchronous>, transform_indices = @transform_4, window_bounds = array<i64: 3, 64, 1>}, {pipeline_mode = #tpu.pipeline_mode<synchronous>, transform_indices = @transform_5, window_bounds = array<i64: 3, 64, 1>}, {transform_indices = @transform_6, window_bounds = array<i64: 3>}, {transform_indices = @transform_7, window_bounds = array<i64: 3, 8>}]} {
    %c0 = arith.constant 0 : index
    %c0_0 = arith.constant 0 : index
    %0 = vector.load %arg1[%c0, %c0_0] : memref<8x8xf32, #tpu.memory_space<vmem>>, vector<8x8xf32>
    %c0_1 = arith.constant 0 : index
    %c0_2 = arith.constant 0 : index
    %c0_3 = arith.constant 0 : index
    %1 = vector.load %arg2[%c0_1, %c0_2, %c0_3] : memref<3x128x8xf32, #tpu.memory_space<vmem>>, vector<1x128x8xf32>
    %2 = vector.shape_cast %1 : vector<1x128x8xf32> to vector<128x8xf32>
    %cst = arith.constant dense<0.000000e+00> : vector<128x8xf32>
    %3 = tpu.matmul %2, %0, %cst {dimension_numbers = #tpu.dot_dimension_numbers<[1], [0], [0], [1], [0, 0, 1, 1], [], []>} : vector<128x8xf32>, vector<8x8xf32>, vector<128x8xf32> -> vector<128x8xf32>
    %c0_4 = arith.constant 0 : index
    %c0_5 = arith.constant 0 : index
    %c0_6 = arith.constant 0 : index
    %4 = vector.load %arg3[%c0_4, %c0_5, %c0_6] : memref<3x128x1xf32, #tpu.memory_space<vmem>>, vector<1x128x1xf32>
    %5 = vector.shape_cast %4 : vector<1x128x1xf32> to vector<128x1xf32>
    %6 = vector.broadcast %5 : vector<128x1xf32> to vector<128x8xf32>
    %7 = arith.addf %3, %6 : vector<128x8xf32>
    %cst_7 = arith.constant 0.000000e+00 : f32
    %8 = vector.broadcast %cst_7 : f32 to vector<128x8xf32>
    %9 = arith.maximumf %7, %8 : vector<128x8xf32>
    %c0_8 = arith.constant 0 : index
    %c0_9 = arith.constant 0 : index
    %c0_10 = arith.constant 0 : index
    %10 = vector.load %arg4[%c0_8, %c0_9, %c0_10] : memref<3x64x128xf32, #tpu.memory_space<vmem>>, vector<1x64x128xf32>
    %11 = vector.shape_cast %10 : vector<1x64x128xf32> to vector<64x128xf32>
    %cst_11 = arith.constant dense<0.000000e+00> : vector<64x8xf32>
    %12 = tpu.matmul %11, %9, %cst_11 {dimension_numbers = #tpu.dot_dimension_numbers<[1], [0], [0], [1], [0, 0, 1, 1], [], []>} : vector<64x128xf32>, vector<128x8xf32>, vector<64x8xf32> -> vector<64x8xf32>
    %c0_12 = arith.constant 0 : index
    %c0_13 = arith.constant 0 : index
    %c0_14 = arith.constant 0 : index
    %13 = vector.load %arg5[%c0_12, %c0_13, %c0_14] : memref<3x64x1xf32, #tpu.memory_space<vmem>>, vector<1x64x1xf32>
    %14 = vector.shape_cast %13 : vector<1x64x1xf32> to vector<64x1xf32>
    %15 = vector.broadcast %14 : vector<64x1xf32> to vector<64x8xf32>
    %16 = arith.addf %12, %15 : vector<64x8xf32>
    %cst_15 = arith.constant 0.000000e+00 : f32
    %17 = vector.broadcast %cst_15 : f32 to vector<64x8xf32>
    %18 = arith.maximumf %16, %17 : vector<64x8xf32>
    %c0_16 = arith.constant 0 : index
    %c0_17 = arith.constant 0 : index
    %c0_18 = arith.constant 0 : index
    %19 = vector.load %arg6[%c0_16, %c0_17, %c0_18] : memref<3x64x1xf32, #tpu.memory_space<vmem>>, vector<1x64x1xf32>
    %20 = vector.shape_cast %19 : vector<1x64x1xf32> to vector<64x1xf32>
    %21 = vector.broadcast %20 : vector<64x1xf32> to vector<64x8xf32>
    %22 = arith.mulf %18, %21 : vector<64x8xf32>
    %cst_19 = arith.constant dense<0.000000e+00> : vector<8xf32>
    %23 = vector.multi_reduction <add>, %22, %cst_19 [0] : vector<64x8xf32> to vector<8xf32>
    %24 = vector.shape_cast %23 : vector<8xf32> to vector<1x8xf32>
    %c0_20 = arith.constant 0 : index
    %25 = memref.load %arg7[%c0_20] : memref<3xf32, #tpu.memory_space<smem>>
    %26 = vector.broadcast %25 : f32 to vector<1x8xf32>
    %27 = arith.addf %24, %26 : vector<1x8xf32>
    %c0_21 = arith.constant 0 : index
    %c0_22 = arith.constant 0 : index
    %28 = vector.load %arg8[%c0_21, %c0_22] : memref<3x8xf32, #tpu.memory_space<vmem>>, vector<1x8xf32>
    tpu.vector_store %arg8[%c0_21, %c0_22], %27 {strides = array<i32>} : memref<3x8xf32, #tpu.memory_space<vmem>>, vector<1x8xf32>,
    %c1 = arith.constant 1 : index
    %c0_23 = arith.constant 0 : index
    %c0_24 = arith.constant 0 : index
    %29 = vector.load %arg2[%c1, %c0_23, %c0_24] : memref<3x128x8xf32, #tpu.memory_space<vmem>>, vector<1x128x8xf32>
    %30 = vector.shape_cast %29 : vector<1x128x8xf32> to vector<128x8xf32>
    %cst_25 = arith.constant dense<0.000000e+00> : vector<128x8xf32>
    %31 = tpu.matmul %30, %0, %cst_25 {dimension_numbers = #tpu.dot_dimension_numbers<[1], [0], [0], [1], [0, 0, 1, 1], [], []>} : vector<128x8xf32>, vector<8x8xf32>, vector<128x8xf32> -> vector<128x8xf32>
    %c1_26 = arith.constant 1 : index
    %c0_27 = arith.constant 0 : index
    %c0_28 = arith.constant 0 : index
    %32 = vector.load %arg3[%c1_26, %c0_27, %c0_28] : memref<3x128x1xf32, #tpu.memory_space<vmem>>, vector<1x128x1xf32>
    %33 = vector.shape_cast %32 : vector<1x128x1xf32> to vector<128x1xf32>
    %34 = vector.broadcast %33 : vector<128x1xf32> to vector<128x8xf32>
    %35 = arith.addf %31, %34 : vector<128x8xf32>
    %cst_29 = arith.constant 0.000000e+00 : f32
    %36 = vector.broadcast %cst_29 : f32 to vector<128x8xf32>
    %37 = arith.maximumf %35, %36 : vector<128x8xf32>
    %c1_30 = arith.constant 1 : index
    %c0_31 = arith.constant 0 : index
    %c0_32 = arith.constant 0 : index
    %38 = vector.load %arg4[%c1_30, %c0_31, %c0_32] : memref<3x64x128xf32, #tpu.memory_space<vmem>>, vector<1x64x128xf32>
    %39 = vector.shape_cast %38 : vector<1x64x128xf32> to vector<64x128xf32>
    %cst_33 = arith.constant dense<0.000000e+00> : vector<64x8xf32>
    %40 = tpu.matmul %39, %37, %cst_33 {dimension_numbers = #tpu.dot_dimension_numbers<[1], [0], [0], [1], [0, 0, 1, 1], [], []>} : vector<64x128xf32>, vector<128x8xf32>, vector<64x8xf32> -> vector<64x8xf32>
    %c1_34 = arith.constant 1 : index
    %c0_35 = arith.constant 0 : index
    %c0_36 = arith.constant 0 : index
    %41 = vector.load %arg5[%c1_34, %c0_35, %c0_36] : memref<3x64x1xf32, #tpu.memory_space<vmem>>, vector<1x64x1xf32>
    %42 = vector.shape_cast %41 : vector<1x64x1xf32> to vector<64x1xf32>
    %43 = vector.broadcast %42 : vector<64x1xf32> to vector<64x8xf32>
    %44 = arith.addf %40, %43 : vector<64x8xf32>
    %cst_37 = arith.constant 0.000000e+00 : f32
    %45 = vector.broadcast %cst_37 : f32 to vector<64x8xf32>
    %46 = arith.maximumf %44, %45 : vector<64x8xf32>
    %c1_38 = arith.constant 1 : index
    %c0_39 = arith.constant 0 : index
    %c0_40 = arith.constant 0 : index
    %47 = vector.load %arg6[%c1_38, %c0_39, %c0_40] : memref<3x64x1xf32, #tpu.memory_space<vmem>>, vector<1x64x1xf32>
    %48 = vector.shape_cast %47 : vector<1x64x1xf32> to vector<64x1xf32>
    %49 = vector.broadcast %48 : vector<64x1xf32> to vector<64x8xf32>
    %50 = arith.mulf %46, %49 : vector<64x8xf32>
    %cst_41 = arith.constant dense<0.000000e+00> : vector<8xf32>
    %51 = vector.multi_reduction <add>, %50, %cst_41 [0] : vector<64x8xf32> to vector<8xf32>
    %52 = vector.shape_cast %51 : vector<8xf32> to vector<1x8xf32>
    %c1_42 = arith.constant 1 : index
    %53 = memref.load %arg7[%c1_42] : memref<3xf32, #tpu.memory_space<smem>>
    %54 = vector.broadcast %53 : f32 to vector<1x8xf32>
    %55 = arith.addf %52, %54 : vector<1x8xf32>
    %c1_43 = arith.constant 1 : index
    %c0_44 = arith.constant 0 : index
    %56 = vector.load %arg8[%c1_43, %c0_44] : memref<3x8xf32, #tpu.memory_space<vmem>>, vector<1x8xf32>
    tpu.vector_store %arg8[%c1_43, %c0_44], %55 {strides = array<i32>} : memref<3x8xf32, #tpu.memory_space<vmem>>, vector<1x8xf32>,
    %c2 = arith.constant 2 : index
    %c0_45 = arith.constant 0 : index
    %c0_46 = arith.constant 0 : index
    %57 = vector.load %arg2[%c2, %c0_45, %c0_46] : memref<3x128x8xf32, #tpu.memory_space<vmem>>, vector<1x128x8xf32>
    %58 = vector.shape_cast %57 : vector<1x128x8xf32> to vector<128x8xf32>
    %cst_47 = arith.constant dense<0.000000e+00> : vector<128x8xf32>
    %59 = tpu.matmul %58, %0, %cst_47 {dimension_numbers = #tpu.dot_dimension_numbers<[1], [0], [0], [1], [0, 0, 1, 1], [], []>} : vector<128x8xf32>, vector<8x8xf32>, vector<128x8xf32> -> vector<128x8xf32>
    %c2_48 = arith.constant 2 : index
    %c0_49 = arith.constant 0 : index
    %c0_50 = arith.constant 0 : index
    %60 = vector.load %arg3[%c2_48, %c0_49, %c0_50] : memref<3x128x1xf32, #tpu.memory_space<vmem>>, vector<1x128x1xf32>
    %61 = vector.shape_cast %60 : vector<1x128x1xf32> to vector<128x1xf32>
    %62 = vector.broadcast %61 : vector<128x1xf32> to vector<128x8xf32>
    %63 = arith.addf %59, %62 : vector<128x8xf32>
    %cst_51 = arith.constant 0.000000e+00 : f32
    %64 = vector.broadcast %cst_51 : f32 to vector<128x8xf32>
    %65 = arith.maximumf %63, %64 : vector<128x8xf32>
    %c2_52 = arith.constant 2 : index
    %c0_53 = arith.constant 0 : index
    %c0_54 = arith.constant 0 : index
    %66 = vector.load %arg4[%c2_52, %c0_53, %c0_54] : memref<3x64x128xf32, #tpu.memory_space<vmem>>, vector<1x64x128xf32>
    %67 = vector.shape_cast %66 : vector<1x64x128xf32> to vector<64x128xf32>
    %cst_55 = arith.constant dense<0.000000e+00> : vector<64x8xf32>
    %68 = tpu.matmul %67, %65, %cst_55 {dimension_numbers = #tpu.dot_dimension_numbers<[1], [0], [0], [1], [0, 0, 1, 1], [], []>} : vector<64x128xf32>, vector<128x8xf32>, vector<64x8xf32> -> vector<64x8xf32>
    %c2_56 = arith.constant 2 : index
    %c0_57 = arith.constant 0 : index
    %c0_58 = arith.constant 0 : index
    %69 = vector.load %arg5[%c2_56, %c0_57, %c0_58] : memref<3x64x1xf32, #tpu.memory_space<vmem>>, vector<1x64x1xf32>
    %70 = vector.shape_cast %69 : vector<1x64x1xf32> to vector<64x1xf32>
    %71 = vector.broadcast %70 : vector<64x1xf32> to vector<64x8xf32>
    %72 = arith.addf %68, %71 : vector<64x8xf32>
    %cst_59 = arith.constant 0.000000e+00 : f32
    %73 = vector.broadcast %cst_59 : f32 to vector<64x8xf32>
    %74 = arith.maximumf %72, %73 : vector<64x8xf32>
    %c2_60 = arith.constant 2 : index
    %c0_61 = arith.constant 0 : index
    %c0_62 = arith.constant 0 : index
    %75 = vector.load %arg6[%c2_60, %c0_61, %c0_62] : memref<3x64x1xf32, #tpu.memory_space<vmem>>, vector<1x64x1xf32>
    %76 = vector.shape_cast %75 : vector<1x64x1xf32> to vector<64x1xf32>
    %77 = vector.broadcast %76 : vector<64x1xf32> to vector<64x8xf32>
    %78 = arith.mulf %74, %77 : vector<64x8xf32>
    %cst_63 = arith.constant dense<0.000000e+00> : vector<8xf32>
    %79 = vector.multi_reduction <add>, %78, %cst_63 [0] : vector<64x8xf32> to vector<8xf32>
    %80 = vector.shape_cast %79 : vector<8xf32> to vector<1x8xf32>
    %c2_64 = arith.constant 2 : index
    %81 = memref.load %arg7[%c2_64] : memref<3xf32, #tpu.memory_space<smem>>
    %82 = vector.broadcast %81 : f32 to vector<1x8xf32>
    %83 = arith.addf %80, %82 : vector<1x8xf32>
    %c2_65 = arith.constant 2 : index
    %c0_66 = arith.constant 0 : index
    %84 = vector.load %arg8[%c2_65, %c0_66] : memref<3x8xf32, #tpu.memory_space<vmem>>, vector<1x8xf32>
    tpu.vector_store %arg8[%c2_65, %c0_66], %83 {strides = array<i32>} : memref<3x8xf32, #tpu.memory_space<vmem>>, vector<1x8xf32>,
    return
  }
  func.func @transform_0(%arg0: i32) -> (i32, i32) {
    %c0_i32 = arith.constant 0 : i32
    %c0_i32_0 = arith.constant 0 : i32
    return %c0_i32, %arg0 : i32, i32
  }
  func.func @transform_1(%arg0: i32) -> (i32, i32, i32) {
    %c0_i32 = arith.constant 0 : i32
    %c0_i32_0 = arith.constant 0 : i32
    %c0_i32_1 = arith.constant 0 : i32
    %c0_i32_2 = arith.constant 0 : i32
    return %c0_i32, %c0_i32_0, %c0_i32_1 : i32, i32, i32
  }
  func.func @transform_2(%arg0: i32) -> (i32, i32, i32) {
    %c0_i32 = arith.constant 0 : i32
    %c0_i32_0 = arith.constant 0 : i32
    %c0_i32_1 = arith.constant 0 : i32
    %c0_i32_2 = arith.constant 0 : i32
    return %c0_i32, %c0_i32_0, %c0_i32_1 : i32, i32, i32
  }
  func.func @transform_3(%arg0: i32) -> (i32, i32, i32) {
    %c0_i32 = arith.constant 0 : i32
    %c0_i32_0 = arith.constant 0 : i32
    %c0_i32_1 = arith.constant 0 : i32
    %c0_i32_2 = arith.constant 0 : i32
    return %c0_i32, %c0_i32_0, %c0_i32_1 : i32, i32, i32
  }
  func.func @transform_4(%arg0: i32) -> (i32, i32, i32) {
    %c0_i32 = arith.constant 0 : i32
    %c0_i32_0 = arith.constant 0 : i32
    %c0_i32_1 = arith.constant 0 : i32
    %c0_i32_2 = arith.constant 0 : i32
    return %c0_i32, %c0_i32_0, %c0_i32_1 : i32, i32, i32
  }
  func.func @transform_5(%arg0: i32) -> (i32, i32, i32) {
    %c0_i32 = arith.constant 0 : i32
    %c0_i32_0 = arith.constant 0 : i32
    %c0_i32_1 = arith.constant 0 : i32
    %c0_i32_2 = arith.constant 0 : i32
    return %c0_i32, %c0_i32_0, %c0_i32_1 : i32, i32, i32
  }
  func.func @transform_6(%arg0: i32) -> i32 {
    %c0_i32 = arith.constant 0 : i32
    %c0_i32_0 = arith.constant 0 : i32
    return %c0_i32 : i32
  }
  func.func @transform_7(%arg0: i32) -> (i32, i32) {
    %c0_i32 = arith.constant 0 : i32
    %c0_i32_0 = arith.constant 0 : i32
    return %c0_i32, %arg0 : i32, i32
  }
}

</mosaic_0001>

<llo_original>
// kernel: reward_ensemble_forward.1
$region0: #{reward_ensemble_forward.1}
  #allocation0 [shape = 'u32[]', space=smem, size = 0x4, offset = 0x4, fixed_abs, tag = 'smem constant byte address 0x4 - core index']
  #allocation1 [shape = 'u32[144,128]{1,0:T(1,128)}', space=vmem, size = 0x12000, scoped, tag = 'internal scratch']
  %s0 = inlined_call_operand.vmem [shape: f32[8,8], index: 0, kind: input, shape index: {}]
  %s1 = inlined_call_operand.vmem [shape: f32[3,128,8], index: 1, kind: input, shape index: {}]
  %s2 = inlined_call_operand.vmem [shape: f32[3,128,1], index: 2, kind: input, shape index: {}]
  %s3 = inlined_call_operand.vmem [shape: f32[3,64,128], index: 3, kind: input, shape index: {}]
  %s4 = inlined_call_operand.vmem [shape: f32[3,64,1], index: 4, kind: input, shape index: {}]
  %s5 = inlined_call_operand.vmem [shape: f32[3,64,1], index: 5, kind: input, shape index: {}]
  %s6 = inlined_call_operand.vmem [shape: f32[3], index: 6, kind: input, shape index: {}]
  %s7 = inlined_call_operand.vmem [shape: f32[3,8], index: 7, kind: output, shape index: {}]
  %s8 = sld [smem:[#allocation0]]
  $region42: #{reward_ensemble_forward.1} parent=0
    _
  %s10 = ssub.s32 1, %s8
  %s11 = scalar_select 0, %s10, %s8
  $region1: #{reward_ensemble_forward.1} parent=0
    #allocation2 [shape = 'u8[512]{0}', space=smem, size = 0x200, scoped, tag = 'input window, operand 6, single buffered']
    #allocation3 [shape = 's32[1]{0}', space=sflag, size = 0x4, scoped, tag = 'scoped memory for reward_ensemble_forward.1']
    %12 = vsyncpa [#allocation3], 0
    // Predicated region
    $region2: #{reward_ensemble_forward.1} parent=1 // pred_check
      _
    $region3: #{reward_ensemble_forward.1} parent=1 // pred_check_branch
      %14 = sbr.rel (0) target = $region5
    $region4: #{reward_ensemble_forward.1} parent=1 // pred_region
      _
    $region5: #{reward_ensemble_forward.1} parent=1 // pred_fallthru
      _
    // Predicated region
    $region6: #{reward_ensemble_forward.1} parent=1 // pred_check
      _
    $region7: #{reward_ensemble_forward.1} parent=1 // pred_check_branch
      %16 = sbr.rel (0) target = $region9
    $region8: #{reward_ensemble_forward.1} parent=1 // pred_region
      _
    $region9: #{reward_ensemble_forward.1} parent=1 // pred_fallthru
      _
    // Predicated region
    $region10: #{reward_ensemble_forward.1} parent=1 // pred_check
      _
    $region11: #{reward_ensemble_forward.1} parent=1 // pred_check_branch
      %18 = sbr.rel (0) target = $region13
    $region12: #{reward_ensemble_forward.1} parent=1 // pred_region
      _
    $region13: #{reward_ensemble_forward.1} parent=1 // pred_fallthru
      _
    // Predicated region
    $region14: #{reward_ensemble_forward.1} parent=1 // pred_check
      _
    $region15: #{reward_ensemble_forward.1} parent=1 // pred_check_branch
      %20 = sbr.rel (0) target = $region17
    $region16: #{reward_ensemble_forward.1} parent=1 // pred_region
      _
    $region17: #{reward_ensemble_forward.1} parent=1 // pred_fallthru
      _
    // Predicated region
    $region18: #{reward_ensemble_forward.1} parent=1 // pred_check
      _
    $region19: #{reward_ensemble_forward.1} parent=1 // pred_check_branch
      %22 = sbr.rel (0) target = $region21
    $region20: #{reward_ensemble_forward.1} parent=1 // pred_region
      _
    $region21: #{reward_ensemble_forward.1} parent=1 // pred_fallthru
      _
    // Predicated region
    $region22: #{reward_ensemble_forward.1} parent=1 // pred_check
      _
    $region23: #{reward_ensemble_forward.1} parent=1 // pred_check_branch
      %24 = sbr.rel (0) target = $region25
    $region24: #{reward_ensemble_forward.1} parent=1 // pred_region
      _
    $region25: #{reward_ensemble_forward.1} parent=1 // pred_fallthru
      _
    // Predicated region
    $region26: #{reward_ensemble_forward.1} parent=1 // pred_check
      _
    $region27: #{reward_ensemble_forward.1} parent=1 // pred_check_branch
      %26 = sbr.rel (0) target = $region29
    $region28: #{reward_ensemble_forward.1} parent=1 // pred_region
      %s28 = ssub.s32 16, 16
      %29 = vsyncadd [#allocation3], %s28
      %s31 = sshll.u32 %s6, 4
      %s32 = int_to_ptr.vmem [resolvable:$true] %s31
      %34 = dma.vmem_to_smem %s32, 16, [#allocation2], [#allocation3]
    $region29: #{reward_ensemble_forward.1} parent=1 // pred_fallthru
      _
    // Predicated region
    $region30: #{reward_ensemble_forward.1} parent=1 // pred_check
      _
    $region31: #{reward_ensemble_forward.1} parent=1 // pred_check_branch
      %36 = sbr.rel (0) target = $region33
    $region32: #{reward_ensemble_forward.1} parent=1 // pred_region
      %37 = dma.done [#allocation3], 16
    $region33: #{reward_ensemble_forward.1} parent=1 // pred_fallthru
      _
    %38 = sfence
    %v39 = vld [vmem:[%s0] sm:$0xff]
    %v40 = vld [vmem:[%s1] sm:$0xff]
    %v41 = vld [vmem:[%s1 + $0x8] sm:$0xff]
    %v42 = vld [vmem:[%s1 + $0x10] sm:$0xff]
    %v43 = vld [vmem:[%s1 + $0x18] sm:$0xff]
    %v44 = vld [vmem:[%s1 + $0x20] sm:$0xff]
    %v45 = vld [vmem:[%s1 + $0x28] sm:$0xff]
    %v46 = vld [vmem:[%s1 + $0x30] sm:$0xff]
    %v47 = vld [vmem:[%s1 + $0x38] sm:$0xff]
    %v48 = vld [vmem:[%s1 + $0x40] sm:$0xff]
    %v49 = vld [vmem:[%s1 + $0x48] sm:$0xff]
    %v50 = vld [vmem:[%s1 + $0x50] sm:$0xff]
    %v51 = vld [vmem:[%s1 + $0x58] sm:$0xff]
    %v52 = vld [vmem:[%s1 + $0x60] sm:$0xff]
    %v53 = vld [vmem:[%s1 + $0x68] sm:$0xff]
    %v54 = vld [vmem:[%s1 + $0x70] sm:$0xff]
    %v55 = vld [vmem:[%s1 + $0x78] sm:$0xff]
    %v56 = vld [vmem:[%s2] sm:$0xff]
    %v57 = vld [vmem:[%s2 + $0x8] sm:$0xff]
    %v58 = vld [vmem:[%s2 + $0x10] sm:$0xff]
    %v59 = vld [vmem:[%s2 + $0x18] sm:$0xff]
    %v60 = vld [vmem:[%s2 + $0x20] sm:$0xff]
    %v61 = vld [vmem:[%s2 + $0x28] sm:$0xff]
    %v62 = vld [vmem:[%s2 + $0x30] sm:$0xff]
    %v63 = vld [vmem:[%s2 + $0x38] sm:$0xff]
    %v64 = vld [vmem:[%s2 + $0x40] sm:$0xff]
    %v65 = vld [vmem:[%s2 + $0x48] sm:$0xff]
    %v66 = vld [vmem:[%s2 + $0x50] sm:$0xff]
    %v67 = vld [vmem:[%s2 + $0x58] sm:$0xff]
    %v68 = vld [vmem:[%s2 + $0x60] sm:$0xff]
    %v69 = vld [vmem:[%s2 + $0x68] sm:$0xff]
    %v70 = vld [vmem:[%s2 + $0x70] sm:$0xff]
    %v71 = vld [vmem:[%s2 + $0x78] sm:$0xff]
    %73 = vset.pattern.permute.xlu0 0
    %74 = vperm.xlu0 %73, %v56
    %v75 = vpop.permute.xlu0 %74
    %78 = vset.pattern.permute.xlu0 0
    %79 = vperm.xlu0 %78, %v57
    %v80 = vpop.permute.xlu0 %79
    %83 = vset.pattern.permute.xlu0 0
    %84 = vperm.xlu0 %83, %v58
    %v85 = vpop.permute.xlu0 %84
    %88 = vset.pattern.permute.xlu0 0
    %89 = vperm.xlu0 %88, %v59
    %v90 = vpop.permute.xlu0 %89
    %93 = vset.pattern.permute.xlu0 0
    %94 = vperm.xlu0 %93, %v60
    %v95 = vpop.permute.xlu0 %94
    %98 = vset.pattern.permute.xlu0 0
    %99 = vperm.xlu0 %98, %v61
    %v100 = vpop.permute.xlu0 %99
    %103 = vset.pattern.permute.xlu0 0
    %104 = vperm.xlu0 %103, %v62
    %v105 = vpop.permute.xlu0 %104
    %108 = vset.pattern.permute.xlu0 0
    %109 = vperm.xlu0 %108, %v63
    %v110 = vpop.permute.xlu0 %109
    %113 = vset.pattern.permute.xlu0 0
    %114 = vperm.xlu0 %113, %v64
    %v115 = vpop.permute.xlu0 %114
    %118 = vset.pattern.permute.xlu0 0
    %119 = vperm.xlu0 %118, %v65
    %v120 = vpop.permute.xlu0 %119
    %123 = vset.pattern.permute.xlu0 0
    %124 = vperm.xlu0 %123, %v66
    %v125 = vpop.permute.xlu0 %124
    %128 = vset.pattern.permute.xlu0 0
    %129 = vperm.xlu0 %128, %v67
    %v130 = vpop.permute.xlu0 %129
    %133 = vset.pattern.permute.xlu0 0
    %134 = vperm.xlu0 %133, %v68
    %v135 = vpop.permute.xlu0 %134
    %138 = vset.pattern.permute.xlu0 0
    %139 = vperm.xlu0 %138, %v69
    %v140 = vpop.permute.xlu0 %139
    %143 = vset.pattern.permute.xlu0 0
    %144 = vperm.xlu0 %143, %v70
    %v145 = vpop.permute.xlu0 %144
    %148 = vset.pattern.permute.xlu0 0
    %149 = vperm.xlu0 %148, %v71
    %v150 = vpop.permute.xlu0 %149
    %vm152 = vcmask 64512
    %v154 = vsel %vm152, %v40, 0
    %v157 = vsel %vm152, %v41, 0
    %v160 = vsel %vm152, %v42, 0
    %v163 = vsel %vm152, %v43, 0
    %v166 = vsel %vm152, %v44, 0
    %v169 = vsel %vm152, %v45, 0
    %v172 = vsel %vm152, %v46, 0
    %v175 = vsel %vm152, %v47, 0
    %v178 = vsel %vm152, %v48, 0
    %v181 = vsel %vm152, %v49, 0
    %v184 = vsel %vm152, %v50, 0
    %v187 = vsel %vm152, %v51, 0
    %v190 = vsel %vm152, %v52, 0
    %v193 = vsel %vm152, %v53, 0
    %v196 = vsel %vm152, %v54, 0
    %v199 = vsel %vm152, %v55, 0
    %201 = vmatprep.subr.mxu0 0.0
    %202 = vmatpush1.msra.mxu0 %v39
    %203 = vmatprep.subr.mxu0 0.0
    %204 = vmatpush1.msra.mxu0 0.0
    %205 = vmatprep.subr.mxu0 0.0
    %206 = vmatpush1.msra.mxu0 0.0
    %207 = vmatprep.subr.mxu0 0.0
    %208 = vmatpush1.msra.mxu0 0.0
    %209 = vmatprep.subr.mxu0 0.0
    %210 = vmatpush1.msra.mxu0 0.0
    %211 = vmatprep.subr.mxu0 0.0
    %212 = vmatpush1.msra.mxu0 0.0
    %213 = vmatprep.subr.mxu0 0.0
    %214 = vmatpush1.msra.mxu0 0.0
    %215 = vmatprep.subr.mxu0 0.0
    %216 = vmatpush1.msra.mxu0 0.0
    %217 = vmatprep.subr.mxu0 0.0
    %218 = vmatpush1.msra.mxu0 0.0
    %219 = vmatprep.subr.mxu0 0.0
    %220 = vmatpush1.msra.mxu0 0.0
    %221 = vmatprep.subr.mxu0 0.0
    %222 = vmatpush1.msra.mxu0 0.0
    %223 = vmatprep.subr.mxu0 0.0
    %224 = vmatpush1.msra.mxu0 0.0
    %225 = vmatprep.subr.mxu0 0.0
    %226 = vmatpush1.msra.mxu0 0.0
    %227 = vmatprep.subr.mxu0 0.0
    %228 = vmatpush1.msra.mxu0 0.0
    %229 = vmatprep.subr.mxu0 0.0
    %230 = vmatpush1.msra.mxu0 0.0
    %231 = vmatprep.subr.mxu0 0.0
    %232 = vmatpush1.msra.mxu0 0.0
    %233 = vmatprep.subr.mxu0 0.0
    %234 = vmatpush1.msra.mxu0 0.0
    %235 = vmatprep.subr.mxu0 0.0
    %236 = vmatpush1.msra.mxu0 0.0
    %237 = vmatprep.subr.mxu0 0.0
    %238 = vmatpush1.msra.mxu0 0.0
    %239 = vmatprep.subr.mxu0 0.0
    %240 = vmatpush1.msra.mxu0 0.0
    %241 = vmatprep.subr.mxu0 0.0
    %242 = vmatpush1.msra.mxu0 0.0
    %243 = vmatprep.subr.mxu0 0.0
    %244 = vmatpush1.msra.mxu0 0.0
    %245 = vmatprep.subr.mxu0 0.0
    %246 = vmatpush1.msra.mxu0 0.0
    %247 = vmatprep.subr.mxu0 0.0
    %248 = vmatpush1.msra.mxu0 0.0
    %249 = vmatprep.subr.mxu0 0.0
    %250 = vmatpush1.msra.mxu0 0.0
    %251 = vmatprep.subr.mxu0 0.0
    %252 = vmatpush1.msra.mxu0 0.0
    %253 = vmatprep.subr.mxu0 0.0
    %254 = vmatpush1.msra.mxu0 0.0
    %255 = vmatprep.subr.mxu0 0.0
    %256 = vmatpush1.msra.mxu0 0.0
    %257 = vmatprep.subr.mxu0 0.0
    %258 = vmatpush1.msra.mxu0 0.0
    %259 = vmatprep.subr.mxu0 0.0
    %260 = vmatpush1.msra.mxu0 0.0
    %261 = vmatprep.subr.mxu0 0.0
    %262 = vmatpush1.msra.mxu0 0.0
    %263 = vmatprep.subr.mxu0 0.0
    %264 = vmatpush1.msra.mxu0 0.0
    %265 = vmatprep.mubr.f32.mxu0 0.0
    %266 = vmatmul.mubr.f32.gmra.mrb[0].mxu0 %v154
    %v267 = vpop.f32.mrb[0].mxu0
    %v268 = vadd.f32 %v75, %v267
    %v269 = vpop.f32.mrb[0].mxu0
    %270 = vmatprep.mubr.f32.mxu0 0.0
    %271 = vmatmul.mubr.f32.gmra.mrb[0].mxu0 %v157
    %v272 = vpop.f32.mrb[0].mxu0
    %v273 = vadd.f32 %v80, %v272
    %v274 = vpop.f32.mrb[0].mxu0
    %275 = vmatprep.mubr.f32.mxu0 0.0
    %276 = vmatmul.mubr.f32.gmra.mrb[0].mxu0 %v160
    %v277 = vpop.f32.mrb[0].mxu0
    %v278 = vadd.f32 %v85, %v277
    %v279 = vpop.f32.mrb[0].mxu0
    %280 = vmatprep.mubr.f32.mxu0 0.0
    %281 = vmatmul.mubr.f32.gmra.mrb[0].mxu0 %v163
    %v282 = vpop.f32.mrb[0].mxu0
    %v283 = vadd.f32 %v90, %v282
    %v284 = vpop.f32.mrb[0].mxu0
    %285 = vmatprep.mubr.f32.mxu0 0.0
    %286 = vmatmul.mubr.f32.gmra.mrb[0].mxu0 %v166
    %v287 = vpop.f32.mrb[0].mxu0
    %v288 = vadd.f32 %v95, %v287
    %v289 = vpop.f32.mrb[0].mxu0
    %290 = vmatprep.mubr.f32.mxu0 0.0
    %291 = vmatmul.mubr.f32.gmra.mrb[0].mxu0 %v169
    %v292 = vpop.f32.mrb[0].mxu0
    %v293 = vadd.f32 %v100, %v292
    %v294 = vpop.f32.mrb[0].mxu0
    %295 = vmatprep.mubr.f32.mxu0 0.0
    %296 = vmatmul.mubr.f32.gmra.mrb[0].mxu0 %v172
    %v297 = vpop.f32.mrb[0].mxu0
    %v298 = vadd.f32 %v105, %v297
    %v299 = vpop.f32.mrb[0].mxu0
    %300 = vmatprep.mubr.f32.mxu0 0.0
    %301 = vmatmul.mubr.f32.gmra.mrb[0].mxu0 %v175
    %v302 = vpop.f32.mrb[0].mxu0
    %v303 = vadd.f32 %v110, %v302
    %v304 = vpop.f32.mrb[0].mxu0
    %305 = vmatprep.mubr.f32.mxu0 0.0
    %306 = vmatmul.mubr.f32.gmra.mrb[0].mxu0 %v178
    %v307 = vpop.f32.mrb[0].mxu0
    %v308 = vadd.f32 %v115, %v307
    %v309 = vpop.f32.mrb[0].mxu0
    %310 = vmatprep.mubr.f32.mxu0 0.0
    %311 = vmatmul.mubr.f32.gmra.mrb[0].mxu0 %v181
    %v312 = vpop.f32.mrb[0].mxu0
    %v313 = vadd.f32 %v120, %v312
    %v314 = vpop.f32.mrb[0].mxu0
    %315 = vmatprep.mubr.f32.mxu0 0.0
    %316 = vmatmul.mubr.f32.gmra.mrb[0].mxu0 %v184
    %v317 = vpop.f32.mrb[0].mxu0
    %v318 = vadd.f32 %v125, %v317
    %v319 = vpop.f32.mrb[0].mxu0
    %320 = vmatprep.mubr.f32.mxu0 0.0
    %321 = vmatmul.mubr.f32.gmra.mrb[0].mxu0 %v187
    %v322 = vpop.f32.mrb[0].mxu0
    %v323 = vadd.f32 %v130, %v322
    %v324 = vpop.f32.mrb[0].mxu0
    %325 = vmatprep.mubr.f32.mxu0 0.0
    %326 = vmatmul.mubr.f32.gmra.mrb[0].mxu0 %v190
    %v327 = vpop.f32.mrb[0].mxu0
    %v328 = vadd.f32 %v135, %v327
    %v329 = vpop.f32.mrb[0].mxu0
    %330 = vmatprep.mubr.f32.mxu0 0.0
    %331 = vmatmul.mubr.f32.gmra.mrb[0].mxu0 %v193
    %v332 = vpop.f32.mrb[0].mxu0
    %v333 = vadd.f32 %v140, %v332
    %v334 = vpop.f32.mrb[0].mxu0
    %335 = vmatprep.mubr.f32.mxu0 0.0
    %336 = vmatmul.mubr.f32.gmra.mrb[0].mxu0 %v196
    %v337 = vpop.f32.mrb[0].mxu0
    %v338 = vadd.f32 %v145, %v337
    %v339 = vpop.f32.mrb[0].mxu0
    %340 = vmatprep.mubr.f32.mxu0 0.0
    %341 = vmatmul.mubr.f32.gmra.mrb[0].mxu0 %v199
    %v342 = vpop.f32.mrb[0].mxu0
    %v343 = vadd.f32 %v150, %v342
    %v344 = vpop.f32.mrb[0].mxu0
    %345 = vdwg.mxu0
    %v346 = vmax.f32 %v268, 0.0
    %v347 = vmax.f32 %v273, 0.0
    %v348 = vmax.f32 %v278, 0.0
    %v349 = vmax.f32 %v283, 0.0
    %v350 = vmax.f32 %v288, 0.0
    %v351 = vmax.f32 %v293, 0.0
    %v352 = vmax.f32 %v298, 0.0
    %v353 = vmax.f32 %v303, 0.0
    %v354 = vmax.f32 %v308, 0.0
    %v355 = vmax.f32 %v313, 0.0
    %v356 = vmax.f32 %v318, 0.0
    %v357 = vmax.f32 %v323, 0.0
    %v358 = vmax.f32 %v328, 0.0
    %v359 = vmax.f32 %v333, 0.0
    %v360 = vmax.f32 %v338, 0.0
    %v361 = vmax.f32 %v343, 0.0
    %v362 = vld [vmem:[%s3] sm:$0xff]
    %v363 = vld [vmem:[%s3 + $0x8] sm:$0xff]
    %v364 = vld [vmem:[%s3 + $0x10] sm:$0xff]
    %v365 = vld [vmem:[%s3 + $0x18] sm:$0xff]
    %v366 = vld [vmem:[%s3 + $0x20] sm:$0xff]
    %v367 = vld [vmem:[%s3 + $0x28] sm:$0xff]
    %v368 = vld [vmem:[%s3 + $0x30] sm:$0xff]
    %v369 = vld [vmem:[%s3 + $0x38] sm:$0xff]
    %v370 = vld [vmem:[%s4] sm:$0xff]
    %v371 = vld [vmem:[%s4 + $0x8] sm:$0xff]
    %v372 = vld [vmem:[%s4 + $0x10] sm:$0xff]
    %v373 = vld [vmem:[%s4 + $0x18] sm:$0xff]
    %v374 = vld [vmem:[%s4 + $0x20] sm:$0xff]
    %v375 = vld [vmem:[%s4 + $0x28] sm:$0xff]
    %v376 = vld [vmem:[%s4 + $0x30] sm:$0xff]
    %v377 = vld [vmem:[%s4 + $0x38] sm:$0xff]
    %379 = vset.pattern.permute.xlu0 0
    %380 = vperm.xlu0 %379, %v370
    %v381 = vpop.permute.xlu0 %380
    %384 = vset.pattern.permute.xlu0 0
    %385 = vperm.xlu0 %384, %v371
    %v386 = vpop.permute.xlu0 %385
    %389 = vset.pattern.permute.xlu0 0
    %390 = vperm.xlu0 %389, %v372
    %v391 = vpop.permute.xlu0 %390
    %394 = vset.pattern.permute.xlu0 0
    %395 = vperm.xlu0 %394, %v373
    %v396 = vpop.permute.xlu0 %395
    %399 = vset.pattern.permute.xlu0 0
    %400 = vperm.xlu0 %399, %v374
    %v401 = vpop.permute.xlu0 %400
    %404 = vset.pattern.permute.xlu0 0
    %405 = vperm.xlu0 %404, %v375
    %v406 = vpop.permute.xlu0 %405
    %409 = vset.pattern.permute.xlu0 0
    %410 = vperm.xlu0 %409, %v376
    %v411 = vpop.permute.xlu0 %410
    %414 = vset.pattern.permute.xlu0 0
    %415 = vperm.xlu0 %414, %v377
    %v416 = vpop.permute.xlu0 %415
    %418 = vmatprep.subr.mxu0 0.0
    %419 = vmatpush1.msra.mxu0 %v346
    %420 = vmatprep.subr.mxu0 0.0
    %421 = vmatpush1.msra.mxu0 %v347
    %422 = vmatprep.subr.mxu0 0.0
    %423 = vmatpush1.msra.mxu0 %v348
    %424 = vmatprep.subr.mxu0 0.0
    %425 = vmatpush1.msra.mxu0 %v349
    %426 = vmatprep.subr.mxu0 0.0
    %427 = vmatpush1.msra.mxu0 %v350
    %428 = vmatprep.subr.mxu0 0.0
    %429 = vmatpush1.msra.mxu0 %v351
    %430 = vmatprep.subr.mxu0 0.0
    %431 = vmatpush1.msra.mxu0 %v352
    %432 = vmatprep.subr.mxu0 0.0
    %433 = vmatpush1.msra.mxu0 %v353
    %434 = vmatprep.subr.mxu0 0.0
    %435 = vmatpush1.msra.mxu0 %v354
    %436 = vmatprep.subr.mxu0 0.0
    %437 = vmatpush1.msra.mxu0 %v355
    %438 = vmatprep.subr.mxu0 0.0
    %439 = vmatpush1.msra.mxu0 %v356
    %440 = vmatprep.subr.mxu0 0.0
    %441 = vmatpush1.msra.mxu0 %v357
    %442 = vmatprep.subr.mxu0 0.0
    %443 = vmatpush1.msra.mxu0 %v358
    %444 = vmatprep.subr.mxu0 0.0
    %445 = vmatpush1.msra.mxu0 %v359
    %446 = vmatprep.subr.mxu0 0.0
    %447 = vmatpush1.msra.mxu0 %v360
    %448 = vmatprep.subr.mxu0 0.0
    %449 = vmatpush1.msra.mxu0 %v361
    %450 = vmatprep.subr.mxu0 0.0
    %451 = vmatpush1.msra.mxu0 0.0
    %452 = vmatprep.subr.mxu0 0.0
    %453 = vmatpush1.msra.mxu0 0.0
    %454 = vmatprep.subr.mxu0 0.0
    %455 = vmatpush1.msra.mxu0 0.0
    %456 = vmatprep.subr.mxu0 0.0
    %457 = vmatpush1.msra.mxu0 0.0
    %458 = vmatprep.subr.mxu0 0.0
    %459 = vmatpush1.msra.mxu0 0.0
    %460 = vmatprep.subr.mxu0 0.0
    %461 = vmatpush1.msra.mxu0 0.0
    %462 = vmatprep.subr.mxu0 0.0
    %463 = vmatpush1.msra.mxu0 0.0
    %464 = vmatprep.subr.mxu0 0.0
    %465 = vmatpush1.msra.mxu0 0.0
    %466 = vmatprep.subr.mxu0 0.0
    %467 = vmatpush1.msra.mxu0 0.0
    %468 = vmatprep.subr.mxu0 0.0
    %469 = vmatpush1.msra.mxu0 0.0
    %470 = vmatprep.subr.mxu0 0.0
    %471 = vmatpush1.msra.mxu0 0.0
    %472 = vmatprep.subr.mxu0 0.0
    %473 = vmatpush1.msra.mxu0 0.0
    %474 = vmatprep.subr.mxu0 0.0
    %475 = vmatpush1.msra.mxu0 0.0
    %476 = vmatprep.subr.mxu0 0.0
    %477 = vmatpush1.msra.mxu0 0.0
    %478 = vmatprep.subr.mxu0 0.0
    %479 = vmatpush1.msra.mxu0 0.0
    %480 = vmatprep.subr.mxu0 0.0
    %481 = vmatpush1.msra.mxu0 0.0
    %482 = vmatprep.mubr.f32.mxu0 0.0
    %483 = vmatmul.mubr.f32.gmra.mrb[0].mxu0 %v362
    %v484 = vpop.f32.mrb[0].mxu0
    %v485 = vadd.f32 %v381, %v484
    %v486 = vpop.f32.mrb[0].mxu0
    %487 = vmatprep.mubr.f32.mxu0 0.0
    %488 = vmatmul.mubr.f32.gmra.mrb[0].mxu0 %v363
    %v489 = vpop.f32.mrb[0].mxu0
    %v490 = vadd.f32 %v386, %v489
    %v491 = vpop.f32.mrb[0].mxu0
    %492 = vmatprep.mubr.f32.mxu0 0.0
    %493 = vmatmul.mubr.f32.gmra.mrb[0].mxu0 %v364
    %v494 = vpop.f32.mrb[0].mxu0
    %v495 = vadd.f32 %v391, %v494
    %v496 = vpop.f32.mrb[0].mxu0
    %497 = vmatprep.mubr.f32.mxu0 0.0
    %498 = vmatmul.mubr.f32.gmra.mrb[0].mxu0 %v365
    %v499 = vpop.f32.mrb[0].mxu0
    %v500 = vadd.f32 %v396, %v499
    %v501 = vpop.f32.mrb[0].mxu0
    %502 = vmatprep.mubr.f32.mxu0 0.0
    %503 = vmatmul.mubr.f32.gmra.mrb[0].mxu0 %v366
    %v504 = vpop.f32.mrb[0].mxu0
    %v505 = vadd.f32 %v401, %v504
    %v506 = vpop.f32.mrb[0].mxu0
    %507 = vmatprep.mubr.f32.mxu0 0.0
    %508 = vmatmul.mubr.f32.gmra.mrb[0].mxu0 %v367
    %v509 = vpop.f32.mrb[0].mxu0
    %v510 = vadd.f32 %v406, %v509
    %v511 = vpop.f32.mrb[0].mxu0
    %512 = vmatprep.mubr.f32.mxu0 0.0
    %513 = vmatmul.mubr.f32.gmra.mrb[0].mxu0 %v368
    %v514 = vpop.f32.mrb[0].mxu0
    %v515 = vadd.f32 %v411, %v514
    %v516 = vpop.f32.mrb[0].mxu0
    %517 = vmatprep.mubr.f32.mxu0 0.0
    %518 = vmatmul.mubr.f32.gmra.mrb[0].mxu0 %v369
    %v519 = vpop.f32.mrb[0].mxu0
    %v520 = vadd.f32 %v416, %v519
    %v521 = vpop.f32.mrb[0].mxu0
    %522 = vdwg.mxu0
    %v523 = vmax.f32 %v485, 0.0
    %v524 = vmax.f32 %v490, 0.0
    %v525 = vmax.f32 %v495, 0.0
    %v526 = vmax.f32 %v500, 0.0
    %v527 = vmax.f32 %v505, 0.0
    %v528 = vmax.f32 %v510, 0.0
    %v529 = vmax.f32 %v515, 0.0
    %v530 = vmax.f32 %v520, 0.0
    %v531 = vld [vmem:[%s5] sm:$0xff]
    %v532 = vld [vmem:[%s5 + $0x8] sm:$0xff]
    %v533 = vld [vmem:[%s5 + $0x10] sm:$0xff]
    %v534 = vld [vmem:[%s5 + $0x18] sm:$0xff]
    %v535 = vld [vmem:[%s5 + $0x20] sm:$0xff]
    %v536 = vld [vmem:[%s5 + $0x28] sm:$0xff]
    %v537 = vld [vmem:[%s5 + $0x30] sm:$0xff]
    %v538 = vld [vmem:[%s5 + $0x38] sm:$0xff]
    %540 = vset.pattern.permute.xlu0 0
    %541 = vperm.xlu0 %540, %v531
    %v542 = vpop.permute.xlu0 %541
    %545 = vset.pattern.permute.xlu0 0
    %546 = vperm.xlu0 %545, %v532
    %v547 = vpop.permute.xlu0 %546
    %550 = vset.pattern.permute.xlu0 0
    %551 = vperm.xlu0 %550, %v533
    %v552 = vpop.permute.xlu0 %551
    %555 = vset.pattern.permute.xlu0 0
    %556 = vperm.xlu0 %555, %v534
    %v557 = vpop.permute.xlu0 %556
    %560 = vset.pattern.permute.xlu0 0
    %561 = vperm.xlu0 %560, %v535
    %v562 = vpop.permute.xlu0 %561
    %565 = vset.pattern.permute.xlu0 0
    %566 = vperm.xlu0 %565, %v536
    %v567 = vpop.permute.xlu0 %566
    %570 = vset.pattern.permute.xlu0 0
    %571 = vperm.xlu0 %570, %v537
    %v572 = vpop.permute.xlu0 %571
    %575 = vset.pattern.permute.xlu0 0
    %576 = vperm.xlu0 %575, %v538
    %v577 = vpop.permute.xlu0 %576
    %v579 = vmul.f32 %v523, %v542
    %v580 = vmul.f32 %v524, %v547
    %v581 = vmul.f32 %v525, %v552
    %v582 = vmul.f32 %v526, %v557
    %v583 = vmul.f32 %v527, %v562
    %v584 = vmul.f32 %v528, %v567
    %v585 = vmul.f32 %v529, %v572
    %v586 = vmul.f32 %v530, %v577
    %v587 = vsel %vm152, %v579, 0.0
    %v588 = vsel %vm152, %v580, 0.0
    %v589 = vadd.f32 %v587, %v588
    %v590 = vsel %vm152, %v581, 0.0
    %v591 = vadd.f32 %v589, %v590
    %v592 = vsel %vm152, %v582, 0.0
    %v593 = vadd.f32 %v591, %v592
    %v594 = vsel %vm152, %v583, 0.0
    %v595 = vadd.f32 %v593, %v594
    %v596 = vsel %vm152, %v584, 0.0
    %v597 = vadd.f32 %v595, %v596
    %v598 = vsel %vm152, %v585, 0.0
    %v599 = vadd.f32 %v597, %v598
    %v600 = vsel %vm152, %v586, 0.0
    %v601 = vadd.f32 %v599, %v600
    %v602 = vrot.slane %v601, 4
    %v603 = vadd.f32 %v601, %v602
    %v604 = vrot.slane %v603, 2
    %v605 = vadd.f32 %v603, %v604
    %v606 = vrot.slane %v605, 1
    %v607 = vadd.f32 %v605, %v606
    %s608 = sld [smem:[#allocation2]]
    %v609 = vstv %s608
    %v610 = vadd.f32 %v607, %v609
    %vm611 = vcmask 57344
    %612 = vst.msk [vmem:[%s7] sm:$0x1] %vm611, %v610
    %s613 = scalar_lea.vmem %s1, 128
    %v614 = vld [vmem:[%s613] sm:$0xff]
    %v615 = vld [vmem:[%s613 + $0x8] sm:$0xff]
    %v616 = vld [vmem:[%s613 + $0x10] sm:$0xff]
    %v617 = vld [vmem:[%s613 + $0x18] sm:$0xff]
    %v618 = vld [vmem:[%s613 + $0x20] sm:$0xff]
    %v619 = vld [vmem:[%s613 + $0x28] sm:$0xff]
    %v620 = vld [vmem:[%s613 + $0x30] sm:$0xff]
    %v621 = vld [vmem:[%s613 + $0x38] sm:$0xff]
    %v622 = vld [vmem:[%s613 + $0x40] sm:$0xff]
    %v623 = vld [vmem:[%s613 + $0x48] sm:$0xff]
    %v624 = vld [vmem:[%s613 + $0x50] sm:$0xff]
    %v625 = vld [vmem:[%s613 + $0x58] sm:$0xff]
    %v626 = vld [vmem:[%s613 + $0x60] sm:$0xff]
    %v627 = vld [vmem:[%s613 + $0x68] sm:$0xff]
    %v628 = vld [vmem:[%s613 + $0x70] sm:$0xff]
    %v629 = vld [vmem:[%s613 + $0x78] sm:$0xff]
    %s630 = scalar_lea.vmem %s2, 128
    %v631 = vld [vmem:[%s630] sm:$0xff]
    %v632 = vld [vmem:[%s630 + $0x8] sm:$0xff]
    %v633 = vld [vmem:[%s630 + $0x10] sm:$0xff]
    %v634 = vld [vmem:[%s630 + $0x18] sm:$0xff]
    %v635 = vld [vmem:[%s630 + $0x20] sm:$0xff]
    %v636 = vld [vmem:[%s630 + $0x28] sm:$0xff]
    %v637 = vld [vmem:[%s630 + $0x30] sm:$0xff]
    %v638 = vld [vmem:[%s630 + $0x38] sm:$0xff]
    %v639 = vld [vmem:[%s630 + $0x40] sm:$0xff]
    %v640 = vld [vmem:[%s630 + $0x48] sm:$0xff]
    %v641 = vld [vmem:[%s630 + $0x50] sm:$0xff]
    %v642 = vld [vmem:[%s630 + $0x58] sm:$0xff]
    %v643 = vld [vmem:[%s630 + $0x60] sm:$0xff]
    %v644 = vld [vmem:[%s630 + $0x68] sm:$0xff]
    %v645 = vld [vmem:[%s630 + $0x70] sm:$0xff]
    %v646 = vld [vmem:[%s630 + $0x78] sm:$0xff]
    %648 = vset.pattern.permute.xlu0 0
    %649 = vperm.xlu0 %648, %v631
    %v650 = vpop.permute.xlu0 %649
    %653 = vset.pattern.permute.xlu0 0
    %654 = vperm.xlu0 %653, %v632
    %v655 = vpop.permute.xlu0 %654
    %658 = vset.pattern.permute.xlu0 0
    %659 = vperm.xlu0 %658, %v633
    %v660 = vpop.permute.xlu0 %659
    %663 = vset.pattern.permute.xlu0 0
    %664 = vperm.xlu0 %663, %v634
    %v665 = vpop.permute.xlu0 %664
    %668 = vset.pattern.permute.xlu0 0
    %669 = vperm.xlu0 %668, %v635
    %v670 = vpop.permute.xlu0 %669
    %673 = vset.pattern.permute.xlu0 0
    %674 = vperm.xlu0 %673, %v636
    %v675 = vpop.permute.xlu0 %674
    %678 = vset.pattern.permute.xlu0 0
    %679 = vperm.xlu0 %678, %v637
    %v680 = vpop.permute.xlu0 %679
    %683 = vset.pattern.permute.xlu0 0
    %684 = vperm.xlu0 %683, %v638
    %v685 = vpop.permute.xlu0 %684
    %688 = vset.pattern.permute.xlu0 0
    %689 = vperm.xlu0 %688, %v639
    %v690 = vpop.permute.xlu0 %689
    %693 = vset.pattern.permute.xlu0 0
    %694 = vperm.xlu0 %693, %v640
    %v695 = vpop.permute.xlu0 %694
    %698 = vset.pattern.permute.xlu0 0
    %699 = vperm.xlu0 %698, %v641
    %v700 = vpop.permute.xlu0 %699
    %703 = vset.pattern.permute.xlu0 0
    %704 = vperm.xlu0 %703, %v642
    %v705 = vpop.permute.xlu0 %704
    %708 = vset.pattern.permute.xlu0 0
    %709 = vperm.xlu0 %708, %v643
    %v710 = vpop.permute.xlu0 %709
    %713 = vset.pattern.permute.xlu0 0
    %714 = vperm.xlu0 %713, %v644
    %v715 = vpop.permute.xlu0 %714
    %718 = vset.pattern.permute.xlu0 0
    %719 = vperm.xlu0 %718, %v645
    %v720 = vpop.permute.xlu0 %719
    %723 = vset.pattern.permute.xlu0 0
    %724 = vperm.xlu0 %723, %v646
    %v725 = vpop.permute.xlu0 %724
    %v728 = vsel %vm152, %v614, 0
    %v731 = vsel %vm152, %v615, 0
    %v734 = vsel %vm152, %v616, 0
    %v737 = vsel %vm152, %v617, 0
    %v740 = vsel %vm152, %v618, 0
    %v743 = vsel %vm152, %v619, 0
    %v746 = vsel %vm152, %v620, 0
    %v749 = vsel %vm152, %v621, 0
    %v752 = vsel %vm152, %v622, 0
    %v755 = vsel %vm152, %v623, 0
    %v758 = vsel %vm152, %v624, 0
    %v761 = vsel %vm152, %v625, 0
    %v764 = vsel %vm152, %v626, 0
    %v767 = vsel %vm152, %v627, 0
    %v770 = vsel %vm152, %v628, 0
    %v773 = vsel %vm152, %v629, 0
    %775 = vmatprep.subr.mxu0 0.0
    %776 = vmatpush1.msra.mxu0 %v39
    %777 = vmatprep.subr.mxu0 0.0
    %778 = vmatpush1.msra.mxu0 0.0
    %779 = vmatprep.subr.mxu0 0.0
    %780 = vmatpush1.msra.mxu0 0.0
    %781 = vmatprep.subr.mxu0 0.0
    %782 = vmatpush1.msra.mxu0 0.0
    %783 = vmatprep.subr.mxu0 0.0
    %784 = vmatpush1.msra.mxu0 0.0
    %785 = vmatprep.subr.mxu0 0.0
    %786 = vmatpush1.msra.mxu0 0.0
    %787 = vmatprep.subr.mxu0 0.0
    %788 = vmatpush1.msra.mxu0 0.0
    %789 = vmatprep.subr.mxu0 0.0
    %790 = vmatpush1.msra.mxu0 0.0
    %791 = vmatprep.subr.mxu0 0.0
    %792 = vmatpush1.msra.mxu0 0.0
    %793 = vmatprep.subr.mxu0 0.0
    %794 = vmatpush1.msra.mxu0 0.0
    %795 = vmatprep.subr.mxu0 0.0
    %796 = vmatpush1.msra.mxu0 0.0
    %797 = vmatprep.subr.mxu0 0.0
    %798 = vmatpush1.msra.mxu0 0.0
    %799 = vmatprep.subr.mxu0 0.0
    %800 = vmatpush1.msra.mxu0 0.0
    %801 = vmatprep.subr.mxu0 0.0
    %802 = vmatpush1.msra.mxu0 0.0
    %803 = vmatprep.subr.mxu0 0.0
    %804 = vmatpush1.msra.mxu0 0.0
    %805 = vmatprep.subr.mxu0 0.0
    %806 = vmatpush1.msra.mxu0 0.0
    %807 = vmatprep.subr.mxu0 0.0
    %808 = vmatpush1.msra.mxu0 0.0
    %809 = vmatprep.subr.mxu0 0.0
    %810 = vmatpush1.msra.mxu0 0.0
    %811 = vmatprep.subr.mxu0 0.0
    %812 = vmatpush1.msra.mxu0 0.0
    %813 = vmatprep.subr.mxu0 0.0
    %814 = vmatpush1.msra.mxu0 0.0
    %815 = vmatprep.subr.mxu0 0.0
    %816 = vmatpush1.msra.mxu0 0.0
    %817 = vmatprep.subr.mxu0 0.0
    %818 = vmatpush1.msra.mxu0 0.0
    %819 = vmatprep.subr.mxu0 0.0
    %820 = vmatpush1.msra.mxu0 0.0
    %821 = vmatprep.subr.mxu0 0.0
    %822 = vmatpush1.msra.mxu0 0.0
    %823 = vmatprep.subr.mxu0 0.0
    %824 = vmatpush1.msra.mxu0 0.0
    %825 = vmatprep.subr.mxu0 0.0
    %826 = vmatpush1.msra.mxu0 0.0
    %827 = vmatprep.subr.mxu0 0.0
    %828 = vmatpush1.msra.mxu0 0.0
    %829 = vmatprep.subr.mxu0 0.0
    %830 = vmatpush1.msra.mxu0 0.0
    %831 = vmatprep.subr.mxu0 0.0
    %832 = vmatpush1.msra.mxu0 0.0
    %833 = vmatprep.subr.mxu0 0.0
    %834 = vmatpush1.msra.mxu0 0.0
    %835 = vmatprep.subr.mxu0 0.0
    %836 = vmatpush1.msra.mxu0 0.0
    %837 = vmatprep.subr.mxu0 0.0
    %838 = vmatpush1.msra.mxu0 0.0
    %839 = vmatprep.mubr.f32.mxu0 0.0
    %840 = vmatmul.mubr.f32.gmra.mrb[0].mxu0 %v728
    %v841 = vpop.f32.mrb[0].mxu0
    %v842 = vadd.f32 %v650, %v841
    %v843 = vpop.f32.mrb[0].mxu0
    %844 = vmatprep.mubr.f32.mxu0 0.0
    %845 = vmatmul.mubr.f32.gmra.mrb[0].mxu0 %v731
    %v846 = vpop.f32.mrb[0].mxu0
    %v847 = vadd.f32 %v655, %v846
    %v848 = vpop.f32.mrb[0].mxu0
    %849 = vmatprep.mubr.f32.mxu0 0.0
    %850 = vmatmul.mubr.f32.gmra.mrb[0].mxu0 %v734
    %v851 = vpop.f32.mrb[0].mxu0
    %v852 = vadd.f32 %v660, %v851
    %v853 = vpop.f32.mrb[0].mxu0
    %854 = vmatprep.mubr.f32.mxu0 0.0
    %855 = vmatmul.mubr.f32.gmra.mrb[0].mxu0 %v737
    %v856 = vpop.f32.mrb[0].mxu0
    %v857 = vadd.f32 %v665, %v856
    %v858 = vpop.f32.mrb[0].mxu0
    %859 = vmatprep.mubr.f32.mxu0 0.0
    %860 = vmatmul.mubr.f32.gmra.mrb[0].mxu0 %v740
    %v861 = vpop.f32.mrb[0].mxu0
    %v862 = vadd.f32 %v670, %v861
    %v863 = vpop.f32.mrb[0].mxu0
    %864 = vmatprep.mubr.f32.mxu0 0.0
    %865 = vmatmul.mubr.f32.gmra.mrb[0].mxu0 %v743
    %v866 = vpop.f32.mrb[0].mxu0
    %v867 = vadd.f32 %v675, %v866
    %v868 = vpop.f32.mrb[0].mxu0
    %869 = vmatprep.mubr.f32.mxu0 0.0
    %870 = vmatmul.mubr.f32.gmra.mrb[0].mxu0 %v746
    %v871 = vpop.f32.mrb[0].mxu0
    %v872 = vadd.f32 %v680, %v871
    %v873 = vpop.f32.mrb[0].mxu0
    %874 = vmatprep.mubr.f32.mxu0 0.0
    %875 = vmatmul.mubr.f32.gmra.mrb[0].mxu0 %v749
    %v876 = vpop.f32.mrb[0].mxu0
    %v877 = vadd.f32 %v685, %v876
    %v878 = vpop.f32.mrb[0].mxu0
    %879 = vmatprep.mubr.f32.mxu0 0.0
    %880 = vmatmul.mubr.f32.gmra.mrb[0].mxu0 %v752
    %v881 = vpop.f32.mrb[0].mxu0
    %v882 = vadd.f32 %v690, %v881
    %v883 = vpop.f32.mrb[0].mxu0
    %884 = vmatprep.mubr.f32.mxu0 0.0
    %885 = vmatmul.mubr.f32.gmra.mrb[0].mxu0 %v755
    %v886 = vpop.f32.mrb[0].mxu0
    %v887 = vadd.f32 %v695, %v886
    %v888 = vpop.f32.mrb[0].mxu0
    %889 = vmatprep.mubr.f32.mxu0 0.0
    %890 = vmatmul.mubr.f32.gmra.mrb[0].mxu0 %v758
    %v891 = vpop.f32.mrb[0].mxu0
    %v892 = vadd.f32 %v700, %v891
    %v893 = vpop.f32.mrb[0].mxu0
    %894 = vmatprep.mubr.f32.mxu0 0.0
    %895 = vmatmul.mubr.f32.gmra.mrb[0].mxu0 %v761
    %v896 = vpop.f32.mrb[0].mxu0
    %v897 = vadd.f32 %v705, %v896
    %v898 = vpop.f32.mrb[0].mxu0
    %899 = vmatprep.mubr.f32.mxu0 0.0
    %900 = vmatmul.mubr.f32.gmra.mrb[0].mxu0 %v764
    %v901 = vpop.f32.mrb[0].mxu0
    %v902 = vadd.f32 %v710, %v901
    %v903 = vpop.f32.mrb[0].mxu0
    %904 = vmatprep.mubr.f32.mxu0 0.0
    %905 = vmatmul.mubr.f32.gmra.mrb[0].mxu0 %v767
    %v906 = vpop.f32.mrb[0].mxu0
    %v907 = vadd.f32 %v715, %v906
    %v908 = vpop.f32.mrb[0].mxu0
    %909 = vmatprep.mubr.f32.mxu0 0.0
    %910 = vmatmul.mubr.f32.gmra.mrb[0].mxu0 %v770
    %v911 = vpop.f32.mrb[0].mxu0
    %v912 = vadd.f32 %v720, %v911
    %v913 = vpop.f32.mrb[0].mxu0
    %914 = vmatprep.mubr.f32.mxu0 0.0
    %915 = vmatmul.mubr.f32.gmra.mrb[0].mxu0 %v773
    %v916 = vpop.f32.mrb[0].mxu0
    %v917 = vadd.f32 %v725, %v916
    %v918 = vpop.f32.mrb[0].mxu0
    %919 = vdwg.mxu0
    %v920 = vmax.f32 %v842, 0.0
    %v921 = vmax.f32 %v847, 0.0
    %v922 = vmax.f32 %v852, 0.0
    %v923 = vmax.f32 %v857, 0.0
    %v924 = vmax.f32 %v862, 0.0
    %v925 = vmax.f32 %v867, 0.0
    %v926 = vmax.f32 %v872, 0.0
    %v927 = vmax.f32 %v877, 0.0
    %v928 = vmax.f32 %v882, 0.0
    %v929 = vmax.f32 %v887, 0.0
    %v930 = vmax.f32 %v892, 0.0
    %v931 = vmax.f32 %v897, 0.0
    %v932 = vmax.f32 %v902, 0.0
    %v933 = vmax.f32 %v907, 0.0
    %v934 = vmax.f32 %v912, 0.0
    %v935 = vmax.f32 %v917, 0.0
    %s936 = scalar_lea.vmem %s3, 64
    %v937 = vld [vmem:[%s936] sm:$0xff]
    %v938 = vld [vmem:[%s936 + $0x8] sm:$0xff]
    %v939 = vld [vmem:[%s936 + $0x10] sm:$0xff]
    %v940 = vld [vmem:[%s936 + $0x18] sm:$0xff]
    %v941 = vld [vmem:[%s936 + $0x20] sm:$0xff]
    %v942 = vld [vmem:[%s936 + $0x28] sm:$0xff]
    %v943 = vld [vmem:[%s936 + $0x30] sm:$0xff]
    %v944 = vld [vmem:[%s936 + $0x38] sm:$0xff]
    %s945 = scalar_lea.vmem %s4, 64
    %v946 = vld [vmem:[%s945] sm:$0xff]
    %v947 = vld [vmem:[%s945 + $0x8] sm:$0xff]
    %v948 = vld [vmem:[%s945 + $0x10] sm:$0xff]
    %v949 = vld [vmem:[%s945 + $0x18] sm:$0xff]
    %v950 = vld [vmem:[%s945 + $0x20] sm:$0xff]
    %v951 = vld [vmem:[%s945 + $0x28] sm:$0xff]
    %v952 = vld [vmem:[%s945 + $0x30] sm:$0xff]
    %v953 = vld [vmem:[%s945 + $0x38] sm:$0xff]
    %955 = vset.pattern.permute.xlu0 0
    %956 = vperm.xlu0 %955, %v946
    %v957 = vpop.permute.xlu0 %956
    %960 = vset.pattern.permute.xlu0 0
    %961 = vperm.xlu0 %960, %v947
    %v962 = vpop.permute.xlu0 %961
    %965 = vset.pattern.permute.xlu0 0
    %966 = vperm.xlu0 %965, %v948
    %v967 = vpop.permute.xlu0 %966
    %970 = vset.pattern.permute.xlu0 0
    %971 = vperm.xlu0 %970, %v949
    %v972 = vpop.permute.xlu0 %971
    %975 = vset.pattern.permute.xlu0 0
    %976 = vperm.xlu0 %975, %v950
    %v977 = vpop.permute.xlu0 %976
    %980 = vset.pattern.permute.xlu0 0
    %981 = vperm.xlu0 %980, %v951
    %v982 = vpop.permute.xlu0 %981
    %985 = vset.pattern.permute.xlu0 0
    %986 = vperm.xlu0 %985, %v952
    %v987 = vpop.permute.xlu0 %986
    %990 = vset.pattern.permute.xlu0 0
    %991 = vperm.xlu0 %990, %v953
    %v992 = vpop.permute.xlu0 %991
    %994 = vmatprep.subr.mxu0 0.0
    %995 = vmatpush1.msra.mxu0 %v920
    %996 = vmatprep.subr.mxu0 0.0
    %997 = vmatpush1.msra.mxu0 %v921
    %998 = vmatprep.subr.mxu0 0.0
    %999 = vmatpush1.msra.mxu0 %v922
    %1000 = vmatprep.subr.mxu0 0.0
    %1001 = vmatpush1.msra.mxu0 %v923
    %1002 = vmatprep.subr.mxu0 0.0
    %1003 = vmatpush1.msra.mxu0 %v924
    %1004 = vmatprep.subr.mxu0 0.0
    %1005 = vmatpush1.msra.mxu0 %v925
    %1006 = vmatprep.subr.mxu0 0.0
    %1007 = vmatpush1.msra.mxu0 %v926
    %1008 = vmatprep.subr.mxu0 0.0
    %1009 = vmatpush1.msra.mxu0 %v927
    %1010 = vmatprep.subr.mxu0 0.0
    %1011 = vmatpush1.msra.mxu0 %v928
    %1012 = vmatprep.subr.mxu0 0.0
    %1013 = vmatpush1.msra.mxu0 %v929
    %1014 = vmatprep.subr.mxu0 0.0
    %1015 = vmatpush1.msra.mxu0 %v930
    %1016 = vmatprep.subr.mxu0 0.0
    %1017 = vmatpush1.msra.mxu0 %v931
    %1018 = vmatprep.subr.mxu0 0.0
    %1019 = vmatpush1.msra.mxu0 %v932
    %1020 = vmatprep.subr.mxu0 0.0
    %1021 = vmatpush1.msra.mxu0 %v933
    %1022 = vmatprep.subr.mxu0 0.0
    %1023 = vmatpush1.msra.mxu0 %v934
    %1024 = vmatprep.subr.mxu0 0.0
    %1025 = vmatpush1.msra.mxu0 %v935
    %1026 = vmatprep.subr.mxu0 0.0
    %1027 = vmatpush1.msra.mxu0 0.0
    %1028 = vmatprep.subr.mxu0 0.0
    %1029 = vmatpush1.msra.mxu0 0.0
    %1030 = vmatprep.subr.mxu0 0.0
    %1031 = vmatpush1.msra.mxu0 0.0
    %1032 = vmatprep.subr.mxu0 0.0
    %1033 = vmatpush1.msra.mxu0 0.0
    %1034 = vmatprep.subr.mxu0 0.0
    %1035 = vmatpush1.msra.mxu0 0.0
    %1036 = vmatprep.subr.mxu0 0.0
    %1037 = vmatpush1.msra.mxu0 0.0
    %1038 = vmatprep.subr.mxu0 0.0
    %1039 = vmatpush1.msra.mxu0 0.0
    %1040 = vmatprep.subr.mxu0 0.0
    %1041 = vmatpush1.msra.mxu0 0.0
    %1042 = vmatprep.subr.mxu0 0.0
    %1043 = vmatpush1.msra.mxu0 0.0
    %1044 = vmatprep.subr.mxu0 0.0
    %1045 = vmatpush1.msra.mxu0 0.0
    %1046 = vmatprep.subr.mxu0 0.0
    %1047 = vmatpush1.msra.mxu0 0.0
    %1048 = vmatprep.subr.mxu0 0.0
    %1049 = vmatpush1.msra.mxu0 0.0
    %1050 = vmatprep.subr.mxu0 0.0
    %1051 = vmatpush1.msra.mxu0 0.0
    %1052 = vmatprep.subr.mxu0 0.0
    %1053 = vmatpush1.msra.mxu0 0.0
    %1054 = vmatprep.subr.mxu0 0.0
    %1055 = vmatpush1.msra.mxu0 0.0
    %1056 = vmatprep.subr.mxu0 0.0
    %1057 = vmatpush1.msra.mxu0 0.0
    %1058 = vmatprep.mubr.f32.mxu0 0.0
    %1059 = vmatmul.mubr.f32.gmra.mrb[0].mxu0 %v937
    %v1060 = vpop.f32.mrb[0].mxu0
    %v1061 = vadd.f32 %v957, %v1060
    %v1062 = vpop.f32.mrb[0].mxu0
    %1063 = vmatprep.mubr.f32.mxu0 0.0
    %1064 = vmatmul.mubr.f32.gmra.mrb[0].mxu0 %v938
    %v1065 = vpop.f32.mrb[0].mxu0
    %v1066 = vadd.f32 %v962, %v1065
    %v1067 = vpop.f32.mrb[0].mxu0
    %1068 = vmatprep.mubr.f32.mxu0 0.0
    %1069 = vmatmul.mubr.f32.gmra.mrb[0].mxu0 %v939
    %v1070 = vpop.f32.mrb[0].mxu0
    %v1071 = vadd.f32 %v967, %v1070
    %v1072 = vpop.f32.mrb[0].mxu0
    %1073 = vmatprep.mubr.f32.mxu0 0.0
    %1074 = vmatmul.mubr.f32.gmra.mrb[0].mxu0 %v940
    %v1075 = vpop.f32.mrb[0].mxu0
    %v1076 = vadd.f32 %v972, %v1075
    %v1077 = vpop.f32.mrb[0].mxu0
    %1078 = vmatprep.mubr.f32.mxu0 0.0
    %1079 = vmatmul.mubr.f32.gmra.mrb[0].mxu0 %v941
    %v1080 = vpop.f32.mrb[0].mxu0
    %v1081 = vadd.f32 %v977, %v1080
    %v1082 = vpop.f32.mrb[0].mxu0
    %1083 = vmatprep.mubr.f32.mxu0 0.0
    %1084 = vmatmul.mubr.f32.gmra.mrb[0].mxu0 %v942
    %v1085 = vpop.f32.mrb[0].mxu0
    %v1086 = vadd.f32 %v982, %v1085
    %v1087 = vpop.f32.mrb[0].mxu0
    %1088 = vmatprep.mubr.f32.mxu0 0.0
    %1089 = vmatmul.mubr.f32.gmra.mrb[0].mxu0 %v943
    %v1090 = vpop.f32.mrb[0].mxu0
    %v1091 = vadd.f32 %v987, %v1090
    %v1092 = vpop.f32.mrb[0].mxu0
    %1093 = vmatprep.mubr.f32.mxu0 0.0
    %1094 = vmatmul.mubr.f32.gmra.mrb[0].mxu0 %v944
    %v1095 = vpop.f32.mrb[0].mxu0
    %v1096 = vadd.f32 %v992, %v1095
    %v1097 = vpop.f32.mrb[0].mxu0
    %1098 = vdwg.mxu0
    %v1099 = vmax.f32 %v1061, 0.0
    %v1100 = vmax.f32 %v1066, 0.0
    %v1101 = vmax.f32 %v1071, 0.0
    %v1102 = vmax.f32 %v1076, 0.0
    %v1103 = vmax.f32 %v1081, 0.0
    %v1104 = vmax.f32 %v1086, 0.0
    %v1105 = vmax.f32 %v1091, 0.0
    %v1106 = vmax.f32 %v1096, 0.0
    %s1107 = scalar_lea.vmem %s5, 64
    %v1108 = vld [vmem:[%s1107] sm:$0xff]
    %v1109 = vld [vmem:[%s1107 + $0x8] sm:$0xff]
    %v1110 = vld [vmem:[%s1107 + $0x10] sm:$0xff]
    %v1111 = vld [vmem:[%s1107 + $0x18] sm:$0xff]
    %v1112 = vld [vmem:[%s1107 + $0x20] sm:$0xff]
    %v1113 = vld [vmem:[%s1107 + $0x28] sm:$0xff]
    %v1114 = vld [vmem:[%s1107 + $0x30] sm:$0xff]
    %v1115 = vld [vmem:[%s1107 + $0x38] sm:$0xff]
    %1117 = vset.pattern.permute.xlu0 0
    %1118 = vperm.xlu0 %1117, %v1108
    %v1119 = vpop.permute.xlu0 %1118
    %1122 = vset.pattern.permute.xlu0 0
    %1123 = vperm.xlu0 %1122, %v1109
    %v1124 = vpop.permute.xlu0 %1123
    %1127 = vset.pattern.permute.xlu0 0
    %1128 = vperm.xlu0 %1127, %v1110
    %v1129 = vpop.permute.xlu0 %1128
    %1132 = vset.pattern.permute.xlu0 0
    %1133 = vperm.xlu0 %1132, %v1111
    %v1134 = vpop.permute.xlu0 %1133
    %1137 = vset.pattern.permute.xlu0 0
    %1138 = vperm.xlu0 %1137, %v1112
    %v1139 = vpop.permute.xlu0 %1138
    %1142 = vset.pattern.permute.xlu0 0
    %1143 = vperm.xlu0 %1142, %v1113
    %v1144 = vpop.permute.xlu0 %1143
    %1147 = vset.pattern.permute.xlu0 0
    %1148 = vperm.xlu0 %1147, %v1114
    %v1149 = vpop.permute.xlu0 %1148
    %1152 = vset.pattern.permute.xlu0 0
    %1153 = vperm.xlu0 %1152, %v1115
    %v1154 = vpop.permute.xlu0 %1153
    %v1156 = vmul.f32 %v1099, %v1119
    %v1157 = vmul.f32 %v1100, %v1124
    %v1158 = vmul.f32 %v1101, %v1129
    %v1159 = vmul.f32 %v1102, %v1134
    %v1160 = vmul.f32 %v1103, %v1139
    %v1161 = vmul.f32 %v1104, %v1144
    %v1162 = vmul.f32 %v1105, %v1149
    %v1163 = vmul.f32 %v1106, %v1154
    %v1164 = vsel %vm152, %v1156, 0.0
    %v1165 = vsel %vm152, %v1157, 0.0
    %v1166 = vadd.f32 %v1164, %v1165
    %v1167 = vsel %vm152, %v1158, 0.0
    %v1168 = vadd.f32 %v1166, %v1167
    %v1169 = vsel %vm152, %v1159, 0.0
    %v1170 = vadd.f32 %v1168, %v1169
    %v1171 = vsel %vm152, %v1160, 0.0
    %v1172 = vadd.f32 %v1170, %v1171
    %v1173 = vsel %vm152, %v1161, 0.0
    %v1174 = vadd.f32 %v1172, %v1173
    %v1175 = vsel %vm152, %v1162, 0.0
    %v1176 = vadd.f32 %v1174, %v1175
    %v1177 = vsel %vm152, %v1163, 0.0
    %v1178 = vadd.f32 %v1176, %v1177
    %v1179 = vrot.slane %v1178, 4
    %v1180 = vadd.f32 %v1178, %v1179
    %v1181 = vrot.slane %v1180, 2
    %v1182 = vadd.f32 %v1180, %v1181
    %v1183 = vrot.slane %v1182, 1
    %v1184 = vadd.f32 %v1182, %v1183
    %s1185 = sld [smem:[#allocation2 + $0x1]]
    %v1186 = vstv %s1185
    %v1187 = vadd.f32 %v1184, %v1186
    %1188 = vst.msk [vmem:[%s7 + $0x1] sm:$0x1] %vm611, %v1187
    %s1189 = scalar_lea.vmem %s1, 256
    %v1190 = vld [vmem:[%s1189] sm:$0xff]
    %v1191 = vld [vmem:[%s1189 + $0x8] sm:$0xff]
    %v1192 = vld [vmem:[%s1189 + $0x10] sm:$0xff]
    %v1193 = vld [vmem:[%s1189 + $0x18] sm:$0xff]
    %v1194 = vld [vmem:[%s1189 + $0x20] sm:$0xff]
    %v1195 = vld [vmem:[%s1189 + $0x28] sm:$0xff]
    %v1196 = vld [vmem:[%s1189 + $0x30] sm:$0xff]
    %v1197 = vld [vmem:[%s1189 + $0x38] sm:$0xff]
    %v1198 = vld [vmem:[%s1189 + $0x40] sm:$0xff]
    %v1199 = vld [vmem:[%s1189 + $0x48] sm:$0xff]
    %v1200 = vld [vmem:[%s1189 + $0x50] sm:$0xff]
    %v1201 = vld [vmem:[%s1189 + $0x58] sm:$0xff]
    %v1202 = vld [vmem:[%s1189 + $0x60] sm:$0xff]
    %v1203 = vld [vmem:[%s1189 + $0x68] sm:$0xff]
    %v1204 = vld [vmem:[%s1189 + $0x70] sm:$0xff]
    %v1205 = vld [vmem:[%s1189 + $0x78] sm:$0xff]
    %s1206 = scalar_lea.vmem %s2, 256
    %v1207 = vld [vmem:[%s1206] sm:$0xff]
    %v1208 = vld [vmem:[%s1206 + $0x8] sm:$0xff]
    %v1209 = vld [vmem:[%s1206 + $0x10] sm:$0xff]
    %v1210 = vld [vmem:[%s1206 + $0x18] sm:$0xff]
    %v1211 = vld [vmem:[%s1206 + $0x20] sm:$0xff]
    %v1212 = vld [vmem:[%s1206 + $0x28] sm:$0xff]
    %v1213 = vld [vmem:[%s1206 + $0x30] sm:$0xff]
    %v1214 = vld [vmem:[%s1206 + $0x38] sm:$0xff]
    %v1215 = vld [vmem:[%s1206 + $0x40] sm:$0xff]
    %v1216 = vld [vmem:[%s1206 + $0x48] sm:$0xff]
    %v1217 = vld [vmem:[%s1206 + $0x50] sm:$0xff]
    %v1218 = vld [vmem:[%s1206 + $0x58] sm:$0xff]
    %v1219 = vld [vmem:[%s1206 + $0x60] sm:$0xff]
    %v1220 = vld [vmem:[%s1206 + $0x68] sm:$0xff]
    %v1221 = vld [vmem:[%s1206 + $0x70] sm:$0xff]
    %v1222 = vld [vmem:[%s1206 + $0x78] sm:$0xff]
    %1224 = vset.pattern.permute.xlu0 0
    %1225 = vperm.xlu0 %1224, %v1207
    %v1226 = vpop.permute.xlu0 %1225
    %1229 = vset.pattern.permute.xlu0 0
    %1230 = vperm.xlu0 %1229, %v1208
    %v1231 = vpop.permute.xlu0 %1230
    %1234 = vset.pattern.permute.xlu0 0
    %1235 = vperm.xlu0 %1234, %v1209
    %v1236 = vpop.permute.xlu0 %1235
    %1239 = vset.pattern.permute.xlu0 0
    %1240 = vperm.xlu0 %1239, %v1210
    %v1241 = vpop.permute.xlu0 %1240
    %1244 = vset.pattern.permute.xlu0 0
    %1245 = vperm.xlu0 %1244, %v1211
    %v1246 = vpop.permute.xlu0 %1245
    %1249 = vset.pattern.permute.xlu0 0
    %1250 = vperm.xlu0 %1249, %v1212
    %v1251 = vpop.permute.xlu0 %1250
    %1254 = vset.pattern.permute.xlu0 0
    %1255 = vperm.xlu0 %1254, %v1213
    %v1256 = vpop.permute.xlu0 %1255
    %1259 = vset.pattern.permute.xlu0 0
    %1260 = vperm.xlu0 %1259, %v1214
    %v1261 = vpop.permute.xlu0 %1260
    %1264 = vset.pattern.permute.xlu0 0
    %1265 = vperm.xlu0 %1264, %v1215
    %v1266 = vpop.permute.xlu0 %1265
    %1269 = vset.pattern.permute.xlu0 0
    %1270 = vperm.xlu0 %1269, %v1216
    %v1271 = vpop.permute.xlu0 %1270
    %1274 = vset.pattern.permute.xlu0 0
    %1275 = vperm.xlu0 %1274, %v1217
    %v1276 = vpop.permute.xlu0 %1275
    %1279 = vset.pattern.permute.xlu0 0
    %1280 = vperm.xlu0 %1279, %v1218
    %v1281 = vpop.permute.xlu0 %1280
    %1284 = vset.pattern.permute.xlu0 0
    %1285 = vperm.xlu0 %1284, %v1219
    %v1286 = vpop.permute.xlu0 %1285
    %1289 = vset.pattern.permute.xlu0 0
    %1290 = vperm.xlu0 %1289, %v1220
    %v1291 = vpop.permute.xlu0 %1290
    %1294 = vset.pattern.permute.xlu0 0
    %1295 = vperm.xlu0 %1294, %v1221
    %v1296 = vpop.permute.xlu0 %1295
    %1299 = vset.pattern.permute.xlu0 0
    %1300 = vperm.xlu0 %1299, %v1222
    %v1301 = vpop.permute.xlu0 %1300
    %v1304 = vsel %vm152, %v1190, 0
    %v1307 = vsel %vm152, %v1191, 0
    %v1310 = vsel %vm152, %v1192, 0
    %v1313 = vsel %vm152, %v1193, 0
    %v1316 = vsel %vm152, %v1194, 0
    %v1319 = vsel %vm152, %v1195, 0
    %v1322 = vsel %vm152, %v1196, 0
    %v1325 = vsel %vm152, %v1197, 0
    %v1328 = vsel %vm152, %v1198, 0
    %v1331 = vsel %vm152, %v1199, 0
    %v1334 = vsel %vm152, %v1200, 0
    %v1337 = vsel %vm152, %v1201, 0
    %v1340 = vsel %vm152, %v1202, 0
    %v1343 = vsel %vm152, %v1203, 0
    %v1346 = vsel %vm152, %v1204, 0
    %v1349 = vsel %vm152, %v1205, 0
    %1351 = vmatprep.subr.mxu0 0.0
    %1352 = vmatpush1.msra.mxu0 %v39
    %1353 = vmatprep.subr.mxu0 0.0
    %1354 = vmatpush1.msra.mxu0 0.0
    %1355 = vmatprep.subr.mxu0 0.0
    %1356 = vmatpush1.msra.mxu0 0.0
    %1357 = vmatprep.subr.mxu0 0.0
    %1358 = vmatpush1.msra.mxu0 0.0
    %1359 = vmatprep.subr.mxu0 0.0
    %1360 = vmatpush1.msra.mxu0 0.0
    %1361 = vmatprep.subr.mxu0 0.0
    %1362 = vmatpush1.msra.mxu0 0.0
    %1363 = vmatprep.subr.mxu0 0.0
    %1364 = vmatpush1.msra.mxu0 0.0
    %1365 = vmatprep.subr.mxu0 0.0
    %1366 = vmatpush1.msra.mxu0 0.0
    %1367 = vmatprep.subr.mxu0 0.0
    %1368 = vmatpush1.msra.mxu0 0.0
    %1369 = vmatprep.subr.mxu0 0.0
    %1370 = vmatpush1.msra.mxu0 0.0
    %1371 = vmatprep.subr.mxu0 0.0
    %1372 = vmatpush1.msra.mxu0 0.0
    %1373 = vmatprep.subr.mxu0 0.0
    %1374 = vmatpush1.msra.mxu0 0.0
    %1375 = vmatprep.subr.mxu0 0.0
    %1376 = vmatpush1.msra.mxu0 0.0
    %1377 = vmatprep.subr.mxu0 0.0
    %1378 = vmatpush1.msra.mxu0 0.0
    %1379 = vmatprep.subr.mxu0 0.0
    %1380 = vmatpush1.msra.mxu0 0.0
    %1381 = vmatprep.subr.mxu0 0.0
    %1382 = vmatpush1.msra.mxu0 0.0
    %1383 = vmatprep.subr.mxu0 0.0
    %1384 = vmatpush1.msra.mxu0 0.0
    %1385 = vmatprep.subr.mxu0 0.0
    %1386 = vmatpush1.msra.mxu0 0.0
    %1387 = vmatprep.subr.mxu0 0.0
    %1388 = vmatpush1.msra.mxu0 0.0
    %1389 = vmatprep.subr.mxu0 0.0
    %1390 = vmatpush1.msra.mxu0 0.0
    %1391 = vmatprep.subr.mxu0 0.0
    %1392 = vmatpush1.msra.mxu0 0.0
    %1393 = vmatprep.subr.mxu0 0.0
    %1394 = vmatpush1.msra.mxu0 0.0
    %1395 = vmatprep.subr.mxu0 0.0
    %1396 = vmatpush1.msra.mxu0 0.0
    %1397 = vmatprep.subr.mxu0 0.0
    %1398 = vmatpush1.msra.mxu0 0.0
    %1399 = vmatprep.subr.mxu0 0.0
    %1400 = vmatpush1.msra.mxu0 0.0
    %1401 = vmatprep.subr.mxu0 0.0
    %1402 = vmatpush1.msra.mxu0 0.0
    %1403 = vmatprep.subr.mxu0 0.0
    %1404 = vmatpush1.msra.mxu0 0.0
    %1405 = vmatprep.subr.mxu0 0.0
    %1406 = vmatpush1.msra.mxu0 0.0
    %1407 = vmatprep.subr.mxu0 0.0
    %1408 = vmatpush1.msra.mxu0 0.0
    %1409 = vmatprep.subr.mxu0 0.0
    %1410 = vmatpush1.msra.mxu0 0.0
    %1411 = vmatprep.subr.mxu0 0.0
    %1412 = vmatpush1.msra.mxu0 0.0
    %1413 = vmatprep.subr.mxu0 0.0
    %1414 = vmatpush1.msra.mxu0 0.0
    %1415 = vmatprep.mubr.f32.mxu0 0.0
    %1416 = vmatmul.mubr.f32.gmra.mrb[0].mxu0 %v1304
    %v1417 = vpop.f32.mrb[0].mxu0
    %v1418 = vadd.f32 %v1226, %v1417
    %v1419 = vpop.f32.mrb[0].mxu0
    %1420 = vmatprep.mubr.f32.mxu0 0.0
    %1421 = vmatmul.mubr.f32.gmra.mrb[0].mxu0 %v1307
    %v1422 = vpop.f32.mrb[0].mxu0
    %v1423 = vadd.f32 %v1231, %v1422
    %v1424 = vpop.f32.mrb[0].mxu0
    %1425 = vmatprep.mubr.f32.mxu0 0.0
    %1426 = vmatmul.mubr.f32.gmra.mrb[0].mxu0 %v1310
    %v1427 = vpop.f32.mrb[0].mxu0
    %v1428 = vadd.f32 %v1236, %v1427
    %v1429 = vpop.f32.mrb[0].mxu0
    %1430 = vmatprep.mubr.f32.mxu0 0.0
    %1431 = vmatmul.mubr.f32.gmra.mrb[0].mxu0 %v1313
    %v1432 = vpop.f32.mrb[0].mxu0
    %v1433 = vadd.f32 %v1241, %v1432
    %v1434 = vpop.f32.mrb[0].mxu0
    %1435 = vmatprep.mubr.f32.mxu0 0.0
    %1436 = vmatmul.mubr.f32.gmra.mrb[0].mxu0 %v1316
    %v1437 = vpop.f32.mrb[0].mxu0
    %v1438 = vadd.f32 %v1246, %v1437
    %v1439 = vpop.f32.mrb[0].mxu0
    %1440 = vmatprep.mubr.f32.mxu0 0.0
    %1441 = vmatmul.mubr.f32.gmra.mrb[0].mxu0 %v1319
    %v1442 = vpop.f32.mrb[0].mxu0
    %v1443 = vadd.f32 %v1251, %v1442
    %v1444 = vpop.f32.mrb[0].mxu0
    %1445 = vmatprep.mubr.f32.mxu0 0.0
    %1446 = vmatmul.mubr.f32.gmra.mrb[0].mxu0 %v1322
    %v1447 = vpop.f32.mrb[0].mxu0
    %v1448 = vadd.f32 %v1256, %v1447
    %v1449 = vpop.f32.mrb[0].mxu0
    %1450 = vmatprep.mubr.f32.mxu0 0.0
    %1451 = vmatmul.mubr.f32.gmra.mrb[0].mxu0 %v1325
    %v1452 = vpop.f32.mrb[0].mxu0
    %v1453 = vadd.f32 %v1261, %v1452
    %v1454 = vpop.f32.mrb[0].mxu0
    %1455 = vmatprep.mubr.f32.mxu0 0.0
    %1456 = vmatmul.mubr.f32.gmra.mrb[0].mxu0 %v1328
    %v1457 = vpop.f32.mrb[0].mxu0
    %v1458 = vadd.f32 %v1266, %v1457
    %v1459 = vpop.f32.mrb[0].mxu0
    %1460 = vmatprep.mubr.f32.mxu0 0.0
    %1461 = vmatmul.mubr.f32.gmra.mrb[0].mxu0 %v1331
    %v1462 = vpop.f32.mrb[0].mxu0
    %v1463 = vadd.f32 %v1271, %v1462
    %v1464 = vpop.f32.mrb[0].mxu0
    %1465 = vmatprep.mubr.f32.mxu0 0.0
    %1466 = vmatmul.mubr.f32.gmra.mrb[0].mxu0 %v1334
    %v1467 = vpop.f32.mrb[0].mxu0
    %v1468 = vadd.f32 %v1276, %v1467
    %v1469 = vpop.f32.mrb[0].mxu0
    %1470 = vmatprep.mubr.f32.mxu0 0.0
    %1471 = vmatmul.mubr.f32.gmra.mrb[0].mxu0 %v1337
    %v1472 = vpop.f32.mrb[0].mxu0
    %v1473 = vadd.f32 %v1281, %v1472
    %v1474 = vpop.f32.mrb[0].mxu0
    %1475 = vmatprep.mubr.f32.mxu0 0.0
    %1476 = vmatmul.mubr.f32.gmra.mrb[0].mxu0 %v1340
    %v1477 = vpop.f32.mrb[0].mxu0
    %v1478 = vadd.f32 %v1286, %v1477
    %v1479 = vpop.f32.mrb[0].mxu0
    %1480 = vmatprep.mubr.f32.mxu0 0.0
    %1481 = vmatmul.mubr.f32.gmra.mrb[0].mxu0 %v1343
    %v1482 = vpop.f32.mrb[0].mxu0
    %v1483 = vadd.f32 %v1291, %v1482
    %v1484 = vpop.f32.mrb[0].mxu0
    %1485 = vmatprep.mubr.f32.mxu0 0.0
    %1486 = vmatmul.mubr.f32.gmra.mrb[0].mxu0 %v1346
    %v1487 = vpop.f32.mrb[0].mxu0
    %v1488 = vadd.f32 %v1296, %v1487
    %v1489 = vpop.f32.mrb[0].mxu0
    %1490 = vmatprep.mubr.f32.mxu0 0.0
    %1491 = vmatmul.mubr.f32.gmra.mrb[0].mxu0 %v1349
    %v1492 = vpop.f32.mrb[0].mxu0
    %v1493 = vadd.f32 %v1301, %v1492
    %v1494 = vpop.f32.mrb[0].mxu0
    %1495 = vdwg.mxu0
    %v1496 = vmax.f32 %v1418, 0.0
    %v1497 = vmax.f32 %v1423, 0.0
    %v1498 = vmax.f32 %v1428, 0.0
    %v1499 = vmax.f32 %v1433, 0.0
    %v1500 = vmax.f32 %v1438, 0.0
    %v1501 = vmax.f32 %v1443, 0.0
    %v1502 = vmax.f32 %v1448, 0.0
    %v1503 = vmax.f32 %v1453, 0.0
    %v1504 = vmax.f32 %v1458, 0.0
    %v1505 = vmax.f32 %v1463, 0.0
    %v1506 = vmax.f32 %v1468, 0.0
    %v1507 = vmax.f32 %v1473, 0.0
    %v1508 = vmax.f32 %v1478, 0.0
    %v1509 = vmax.f32 %v1483, 0.0
    %v1510 = vmax.f32 %v1488, 0.0
    %v1511 = vmax.f32 %v1493, 0.0
    %s1512 = scalar_lea.vmem %s3, 128
    %v1513 = vld [vmem:[%s1512] sm:$0xff]
    %v1514 = vld [vmem:[%s1512 + $0x8] sm:$0xff]
    %v1515 = vld [vmem:[%s1512 + $0x10] sm:$0xff]
    %v1516 = vld [vmem:[%s1512 + $0x18] sm:$0xff]
    %v1517 = vld [vmem:[%s1512 + $0x20] sm:$0xff]
    %v1518 = vld [vmem:[%s1512 + $0x28] sm:$0xff]
    %v1519 = vld [vmem:[%s1512 + $0x30] sm:$0xff]
    %v1520 = vld [vmem:[%s1512 + $0x38] sm:$0xff]
    %s1521 = scalar_lea.vmem %s4, 128
    %v1522 = vld [vmem:[%s1521] sm:$0xff]
    %v1523 = vld [vmem:[%s1521 + $0x8] sm:$0xff]
    %v1524 = vld [vmem:[%s1521 + $0x10] sm:$0xff]
    %v1525 = vld [vmem:[%s1521 + $0x18] sm:$0xff]
    %v1526 = vld [vmem:[%s1521 + $0x20] sm:$0xff]
    %v1527 = vld [vmem:[%s1521 + $0x28] sm:$0xff]
    %v1528 = vld [vmem:[%s1521 + $0x30] sm:$0xff]
    %v1529 = vld [vmem:[%s1521 + $0x38] sm:$0xff]
    %1531 = vset.pattern.permute.xlu0 0
    %1532 = vperm.xlu0 %1531, %v1522
    %v1533 = vpop.permute.xlu0 %1532
    %1536 = vset.pattern.permute.xlu0 0
    %1537 = vperm.xlu0 %1536, %v1523
    %v1538 = vpop.permute.xlu0 %1537
    %1541 = vset.pattern.permute.xlu0 0
    %1542 = vperm.xlu0 %1541, %v1524
    %v1543 = vpop.permute.xlu0 %1542
    %1546 = vset.pattern.permute.xlu0 0
    %1547 = vperm.xlu0 %1546, %v1525
    %v1548 = vpop.permute.xlu0 %1547
    %1551 = vset.pattern.permute.xlu0 0
    %1552 = vperm.xlu0 %1551, %v1526
    %v1553 = vpop.permute.xlu0 %1552
    %1556 = vset.pattern.permute.xlu0 0
    %1557 = vperm.xlu0 %1556, %v1527
    %v1558 = vpop.permute.xlu0 %1557
    %1561 = vset.pattern.permute.xlu0 0
    %1562 = vperm.xlu0 %1561, %v1528
    %v1563 = vpop.permute.xlu0 %1562
    %1566 = vset.pattern.permute.xlu0 0
    %1567 = vperm.xlu0 %1566, %v1529
    %v1568 = vpop.permute.xlu0 %1567
    %1570 = vmatprep.subr.mxu0 0.0
    %1571 = vmatpush1.msra.mxu0 %v1496
    %1572 = vmatprep.subr.mxu0 0.0
    %1573 = vmatpush1.msra.mxu0 %v1497
    %1574 = vmatprep.subr.mxu0 0.0
    %1575 = vmatpush1.msra.mxu0 %v1498
    %1576 = vmatprep.subr.mxu0 0.0
    %1577 = vmatpush1.msra.mxu0 %v1499
    %1578 = vmatprep.subr.mxu0 0.0
    %1579 = vmatpush1.msra.mxu0 %v1500
    %1580 = vmatprep.subr.mxu0 0.0
    %1581 = vmatpush1.msra.mxu0 %v1501
    %1582 = vmatprep.subr.mxu0 0.0
    %1583 = vmatpush1.msra.mxu0 %v1502
    %1584 = vmatprep.subr.mxu0 0.0
    %1585 = vmatpush1.msra.mxu0 %v1503
    %1586 = vmatprep.subr.mxu0 0.0
    %1587 = vmatpush1.msra.mxu0 %v1504
    %1588 = vmatprep.subr.mxu0 0.0
    %1589 = vmatpush1.msra.mxu0 %v1505
    %1590 = vmatprep.subr.mxu0 0.0
    %1591 = vmatpush1.msra.mxu0 %v1506
    %1592 = vmatprep.subr.mxu0 0.0
    %1593 = vmatpush1.msra.mxu0 %v1507
    %1594 = vmatprep.subr.mxu0 0.0
    %1595 = vmatpush1.msra.mxu0 %v1508
    %1596 = vmatprep.subr.mxu0 0.0
    %1597 = vmatpush1.msra.mxu0 %v1509
    %1598 = vmatprep.subr.mxu0 0.0
    %1599 = vmatpush1.msra.mxu0 %v1510
    %1600 = vmatprep.subr.mxu0 0.0
    %1601 = vmatpush1.msra.mxu0 %v1511
    %1602 = vmatprep.subr.mxu0 0.0
    %1603 = vmatpush1.msra.mxu0 0.0
    %1604 = vmatprep.subr.mxu0 0.0
    %1605 = vmatpush1.msra.mxu0 0.0
    %1606 = vmatprep.subr.mxu0 0.0
    %1607 = vmatpush1.msra.mxu0 0.0
    %1608 = vmatprep.subr.mxu0 0.0
    %1609 = vmatpush1.msra.mxu0 0.0
    %1610 = vmatprep.subr.mxu0 0.0
    %1611 = vmatpush1.msra.mxu0 0.0
    %1612 = vmatprep.subr.mxu0 0.0
    %1613 = vmatpush1.msra.mxu0 0.0
    %1614 = vmatprep.subr.mxu0 0.0
    %1615 = vmatpush1.msra.mxu0 0.0
    %1616 = vmatprep.subr.mxu0 0.0
    %1617 = vmatpush1.msra.mxu0 0.0
    %1618 = vmatprep.subr.mxu0 0.0
    %1619 = vmatpush1.msra.mxu0 0.0
    %1620 = vmatprep.subr.mxu0 0.0
    %1621 = vmatpush1.msra.mxu0 0.0
    %1622 = vmatprep.subr.mxu0 0.0
    %1623 = vmatpush1.msra.mxu0 0.0
    %1624 = vmatprep.subr.mxu0 0.0
    %1625 = vmatpush1.msra.mxu0 0.0
    %1626 = vmatprep.subr.mxu0 0.0
    %1627 = vmatpush1.msra.mxu0 0.0
    %1628 = vmatprep.subr.mxu0 0.0
    %1629 = vmatpush1.msra.mxu0 0.0
    %1630 = vmatprep.subr.mxu0 0.0
    %1631 = vmatpush1.msra.mxu0 0.0
    %1632 = vmatprep.subr.mxu0 0.0
    %1633 = vmatpush1.msra.mxu0 0.0
    %1634 = vmatprep.mubr.f32.mxu0 0.0
    %1635 = vmatmul.mubr.f32.gmra.mrb[0].mxu0 %v1513
    %v1636 = vpop.f32.mrb[0].mxu0
    %v1637 = vadd.f32 %v1533, %v1636
    %v1638 = vpop.f32.mrb[0].mxu0
    %1639 = vmatprep.mubr.f32.mxu0 0.0
    %1640 = vmatmul.mubr.f32.gmra.mrb[0].mxu0 %v1514
    %v1641 = vpop.f32.mrb[0].mxu0
    %v1642 = vadd.f32 %v1538, %v1641
    %v1643 = vpop.f32.mrb[0].mxu0
    %1644 = vmatprep.mubr.f32.mxu0 0.0
    %1645 = vmatmul.mubr.f32.gmra.mrb[0].mxu0 %v1515
    %v1646 = vpop.f32.mrb[0].mxu0
    %v1647 = vadd.f32 %v1543, %v1646
    %v1648 = vpop.f32.mrb[0].mxu0
    %1649 = vmatprep.mubr.f32.mxu0 0.0
    %1650 = vmatmul.mubr.f32.gmra.mrb[0].mxu0 %v1516
    %v1651 = vpop.f32.mrb[0].mxu0
    %v1652 = vadd.f32 %v1548, %v1651
    %v1653 = vpop.f32.mrb[0].mxu0
    %1654 = vmatprep.mubr.f32.mxu0 0.0
    %1655 = vmatmul.mubr.f32.gmra.mrb[0].mxu0 %v1517
    %v1656 = vpop.f32.mrb[0].mxu0
    %v1657 = vadd.f32 %v1553, %v1656
    %v1658 = vpop.f32.mrb[0].mxu0
    %1659 = vmatprep.mubr.f32.mxu0 0.0
    %1660 = vmatmul.mubr.f32.gmra.mrb[0].mxu0 %v1518
    %v1661 = vpop.f32.mrb[0].mxu0
    %v1662 = vadd.f32 %v1558, %v1661
    %v1663 = vpop.f32.mrb[0].mxu0
    %1664 = vmatprep.mubr.f32.mxu0 0.0
    %1665 = vmatmul.mubr.f32.gmra.mrb[0].mxu0 %v1519
    %v1666 = vpop.f32.mrb[0].mxu0
    %v1667 = vadd.f32 %v1563, %v1666
    %v1668 = vpop.f32.mrb[0].mxu0
    %1669 = vmatprep.mubr.f32.mxu0 0.0
    %1670 = vmatmul.mubr.f32.gmra.mrb[0].mxu0 %v1520
    %v1671 = vpop.f32.mrb[0].mxu0
    %v1672 = vadd.f32 %v1568, %v1671
    %v1673 = vpop.f32.mrb[0].mxu0
    %1674 = vdwg.mxu0
    %v1675 = vmax.f32 %v1637, 0.0
    %v1676 = vmax.f32 %v1642, 0.0
    %v1677 = vmax.f32 %v1647, 0.0
    %v1678 = vmax.f32 %v1652, 0.0
    %v1679 = vmax.f32 %v1657, 0.0
    %v1680 = vmax.f32 %v1662, 0.0
    %v1681 = vmax.f32 %v1667, 0.0
    %v1682 = vmax.f32 %v1672, 0.0
    %s1683 = scalar_lea.vmem %s5, 128
    %v1684 = vld [vmem:[%s1683] sm:$0xff]
    %v1685 = vld [vmem:[%s1683 + $0x8] sm:$0xff]
    %v1686 = vld [vmem:[%s1683 + $0x10] sm:$0xff]
    %v1687 = vld [vmem:[%s1683 + $0x18] sm:$0xff]
    %v1688 = vld [vmem:[%s1683 + $0x20] sm:$0xff]
    %v1689 = vld [vmem:[%s1683 + $0x28] sm:$0xff]
    %v1690 = vld [vmem:[%s1683 + $0x30] sm:$0xff]
    %v1691 = vld [vmem:[%s1683 + $0x38] sm:$0xff]
    %1693 = vset.pattern.permute.xlu0 0
    %1694 = vperm.xlu0 %1693, %v1684
    %v1695 = vpop.permute.xlu0 %1694
    %1698 = vset.pattern.permute.xlu0 0
    %1699 = vperm.xlu0 %1698, %v1685
    %v1700 = vpop.permute.xlu0 %1699
    %1703 = vset.pattern.permute.xlu0 0
    %1704 = vperm.xlu0 %1703, %v1686
    %v1705 = vpop.permute.xlu0 %1704
    %1708 = vset.pattern.permute.xlu0 0
    %1709 = vperm.xlu0 %1708, %v1687
    %v1710 = vpop.permute.xlu0 %1709
    %1713 = vset.pattern.permute.xlu0 0
    %1714 = vperm.xlu0 %1713, %v1688
    %v1715 = vpop.permute.xlu0 %1714
    %1718 = vset.pattern.permute.xlu0 0
    %1719 = vperm.xlu0 %1718, %v1689
    %v1720 = vpop.permute.xlu0 %1719
    %1723 = vset.pattern.permute.xlu0 0
    %1724 = vperm.xlu0 %1723, %v1690
    %v1725 = vpop.permute.xlu0 %1724
    %1728 = vset.pattern.permute.xlu0 0
    %1729 = vperm.xlu0 %1728, %v1691
    %v1730 = vpop.permute.xlu0 %1729
    %v1732 = vmul.f32 %v1675, %v1695
    %v1733 = vmul.f32 %v1676, %v1700
    %v1734 = vmul.f32 %v1677, %v1705
    %v1735 = vmul.f32 %v1678, %v1710
    %v1736 = vmul.f32 %v1679, %v1715
    %v1737 = vmul.f32 %v1680, %v1720
    %v1738 = vmul.f32 %v1681, %v1725
    %v1739 = vmul.f32 %v1682, %v1730
    %v1740 = vsel %vm152, %v1732, 0.0
    %v1741 = vsel %vm152, %v1733, 0.0
    %v1742 = vadd.f32 %v1740, %v1741
    %v1743 = vsel %vm152, %v1734, 0.0
    %v1744 = vadd.f32 %v1742, %v1743
    %v1745 = vsel %vm152, %v1735, 0.0
    %v1746 = vadd.f32 %v1744, %v1745
    %v1747 = vsel %vm152, %v1736, 0.0
    %v1748 = vadd.f32 %v1746, %v1747
    %v1749 = vsel %vm152, %v1737, 0.0
    %v1750 = vadd.f32 %v1748, %v1749
    %v1751 = vsel %vm152, %v1738, 0.0
    %v1752 = vadd.f32 %v1750, %v1751
    %v1753 = vsel %vm152, %v1739, 0.0
    %v1754 = vadd.f32 %v1752, %v1753
    %v1755 = vrot.slane %v1754, 4
    %v1756 = vadd.f32 %v1754, %v1755
    %v1757 = vrot.slane %v1756, 2
    %v1758 = vadd.f32 %v1756, %v1757
    %v1759 = vrot.slane %v1758, 1
    %v1760 = vadd.f32 %v1758, %v1759
    %s1761 = sld [smem:[#allocation2 + $0x2]]
    %v1762 = vstv %s1761
    %v1763 = vadd.f32 %v1760, %v1762
    %1764 = vst.msk [vmem:[%s7 + $0x2] sm:$0x1] %vm611, %v1763
    // Predicated region
    $region34: #{reward_ensemble_forward.1} parent=1 // pred_check
      _
    $region35: #{reward_ensemble_forward.1} parent=1 // pred_check_branch
      %1766 = sbr.rel (0) target = $region37
    $region36: #{reward_ensemble_forward.1} parent=1 // pred_region
      _
    $region37: #{reward_ensemble_forward.1} parent=1 // pred_fallthru
      _
    // Predicated region
    $region38: #{reward_ensemble_forward.1} parent=1 // pred_check
      _
    $region39: #{reward_ensemble_forward.1} parent=1 // pred_check_branch
      %1768 = sbr.rel (0) target = $region41
    $region40: #{reward_ensemble_forward.1} parent=1 // pred_region
      _
    $region41: #{reward_ensemble_forward.1} parent=1 // pred_fallthru
      _
    %1769 = vsyncpa [#allocation3], 1

</llo_original>
